<compile_context>
chip_gen: v6e
topology: v6e:2x2x1
jax: 0.10.0
libtpu: 0.0.40
codegen_flags: <defaults>
</compile_context>

<pallas_src>
import jax
import jax.numpy as jnp
from jax.experimental import pallas as pl
from jax.experimental.pallas import tpu as pltpu

D_MODEL = 768          # t5-base d_model = 32 * 24 (matches KronALinear(768, 768, 32, 24))
A_DIM = 32
B_DIM = 24
SCALE = 1.0


def merged_linear_kernel(x_ref, w_ref, o_ref):
    """One (layer, token-tile) grid step: y = x @ Wm, Wm already merged + pre-transposed."""
    o_ref[...] = jnp.dot(
        x_ref[...], w_ref[...], preferred_element_type=jnp.float32
    ).astype(o_ref.dtype)


def merge_krona_weight(a, b, w, scale=SCALE, dtype=jnp.bfloat16):
    """Fold the KronA adapter into the frozen weight and pre-transpose.

    Returns Wm = (W @ (I + scale * kron(A, B)))^T with shape (d_in, d_out), so that
        x @ Wm == (x + x @ kron(A, B)^T) @ W^T      (the forward pre-hook semantics).
    This is parameter glue: do it once per parameter update, not per forward call.
    """
    k = scale * jnp.kron(a, b)            # (d_in, d_in) input-side delta
    wm = w + w @ k                        # W (I + K), shape (d_out, d_in)
    return wm.T.astype(dtype)             # (d_in, d_out): no transpose inside the kernel


def krona_adapted_linear_stack(x, wm_stack, *, tm=512, out_dtype=jnp.float32):
    """Apply L merged q/v projections to the same activations in ONE pallas_call.

    x:        (n_tokens, d_in)   activations (bf16 recommended)
    wm_stack: (L, d_in, d_out)   merged, pre-transposed weights
    returns:  (L, n_tokens, d_out)
    """
    n, d_in = x.shape
    num_layers, d_in2, d_out = wm_stack.shape
    assert d_in == d_in2
    assert d_in % 128 == 0 and d_out % 128 == 0

    row = 16 if x.dtype == jnp.bfloat16 else 8      # sublane packing for the M tile
    tm = max(row, min(tm, n))
    tm = pl.cdiv(tm, row) * row
    n_pad = pl.cdiv(n, tm) * tm
    if n_pad != n:
        x = jnp.pad(x, ((0, n_pad - n), (0, 0)))

    # Inner (token) axis varies fastest; the weight block index only depends on the
    # layer axis, so each layer's weight is DMA'd once and reused across token tiles.
    grid = (num_layers, n_pad // tm)

    out = pl.pallas_call(
        merged_linear_kernel,
        out_shape=jax.ShapeDtypeStruct((num_layers, n_pad, d_out), out_dtype),
        grid_spec=pltpu.PrefetchScalarGridSpec(
            num_scalar_prefetch=0,
            grid=grid,
            in_specs=[
                pl.BlockSpec((tm, d_in), lambda l, i: (i, 0)),
                pl.BlockSpec((None, d_in, d_out), lambda l, i: (l, 0, 0)),
            ],
            out_specs=pl.BlockSpec((None, tm, d_out), lambda l, i: (l, i, 0)),
        ),
        compiler_params=pltpu.CompilerParams(
            dimension_semantics=("parallel", "parallel")),
    )(x, wm_stack)

    if n_pad != n:
        out = out[:, :n, :]
    return out


def krona_adapted_linear_ref(x, a, b, w, scale=SCALE):
    """Pure-JAX f32 reference of the original two-step semantics (pre-hook + linear)."""
    n = x.shape[0]
    x3 = x.reshape(n, A_DIM, B_DIM)
    delta = scale * jnp.einsum('pr,nrs,qs->npq', a, x3, b).reshape(n, -1)
    return (x + delta) @ w.T


def init_krona_params(key, d_in, d_out):
    """Deterministic init of one KronALinear(d_in, d_out, 32, 24) + frozen weight."""
    ka, kb, kw = jax.random.split(key, 3)
    a = jax.random.normal(ka, (A_DIM, A_DIM), jnp.float32) * (1.0 / A_DIM)
    b = jax.random.normal(kb, (B_DIM, B_DIM), jnp.float32) * (1.0 / B_DIM)
    w = jax.random.normal(kw, (d_out, d_in), jnp.float32) * (1.0 / jnp.sqrt(d_in))
    return a, b, w


if __name__ == "__main__":
    key = jax.random.PRNGKey(0)

    # Tiny T5-like config: 1 encoder block, 1 decoder block (self + cross attention),
    # KronA on q and v of each attention module — mirroring the ModuleDict layout.
    krona_names = []
    for enc_idx in range(1):
        krona_names += [f'encoder.{enc_idx}.q', f'encoder.{enc_idx}.v']
    for dec_idx in range(1):
        krona_names += [f'decoder.{dec_idx}.self.q', f'decoder.{dec_idx}.self.v',
                        f'decoder.{dec_idx}.cross.q', f'decoder.{dec_idx}.cross.v']

    params = {}
    for i, name in enumerate(krona_names):
        params[name] = init_krona_params(jax.random.fold_in(key, i), D_MODEL, D_MODEL)

    # Merge/transpose all adapters ONCE (per parameter update), stack along layer axis.
    wm_stack = jnp.stack(
        [merge_krona_weight(a, b, w, scale=SCALE, dtype=jnp.bfloat16)
         for (a, b, w) in (params[n] for n in krona_names)],
        axis=0)                                              # (6, 768, 768) bf16

    # Example activations: batch=2, seq=8, hidden=d_model=768 -> tokens=(16, 768).
    batch, seq = 2, 8
    x = jax.random.normal(jax.random.fold_in(key, 12345),
                          (batch * seq, D_MODEL), jnp.float32)

    # Single fused Pallas call for all six q/v projections (bf16 in, f32 out).
    out = krona_adapted_linear_stack(x.astype(jnp.bfloat16), wm_stack,
                                     tm=512, out_dtype=jnp.float32)
    out = jax.block_until_ready(out)

    ok = True
    for li, name in enumerate(krona_names):
        a, b, w = params[name]
        ref = krona_adapted_linear_ref(x, a, b, w, scale=SCALE)
        if not jnp.allclose(out[li], ref, rtol=2e-2, atol=2e-2):
            ok = False
            print(f"MISMATCH in {name}: max err "
                  f"{float(jnp.max(jnp.abs(out[li] - ref)))}")

    if ok:
        print("KERNEL_OK")
</pallas_src>

<mosaic_0001>
module attributes {stable_mosaic.version = 11 : i64} {
  func.func @merged_linear_kernel(%arg0: i32, %arg1: i32, %arg2: memref<16x768xbf16, #tpu.memory_space<vmem>>, %arg3: memref<1x768x768xbf16, #tpu.memory_space<vmem>>, %arg4: memref<1x16x768xf32, #tpu.memory_space<vmem>>) attributes {dimension_semantics = [#tpu.dimension_semantics<parallel>, #tpu.dimension_semantics<parallel>], iteration_bounds = array<i64: 6, 1>, scalar_prefetch = 0 : i64, scratch_operands = 0 : i64, tpu.core_type = #tpu.core_type<tc>, window_params = [{transform_indices = @transform_0, window_bounds = array<i64: 16, 768>}, {transform_indices = @transform_1, window_bounds = array<i64: 1, 768, 768>}, {transform_indices = @transform_2, window_bounds = array<i64: 1, 16, 768>}]} {
    %c0 = arith.constant 0 : index
    %c0_0 = arith.constant 0 : index
    %0 = vector.load %arg2[%c0, %c0_0] : memref<16x768xbf16, #tpu.memory_space<vmem>>, vector<16x768xbf16>
    %c0_1 = arith.constant 0 : index
    %c0_2 = arith.constant 0 : index
    %c0_3 = arith.constant 0 : index
    %1 = vector.load %arg3[%c0_1, %c0_2, %c0_3] : memref<1x768x768xbf16, #tpu.memory_space<vmem>>, vector<1x768x768xbf16>
    %2 = vector.shape_cast %1 : vector<1x768x768xbf16> to vector<768x768xbf16>
    %cst = arith.constant dense<0.000000e+00> : vector<16x768xf32>
    %3 = tpu.matmul %0, %2, %cst {dimension_numbers = #tpu.dot_dimension_numbers<[1], [0], [0], [1], [0, 0, 1, 1], [], []>} : vector<16x768xbf16>, vector<768x768xbf16>, vector<16x768xf32> -> vector<16x768xf32>
    %c0_4 = arith.constant 0 : index
    %c0_5 = arith.constant 0 : index
    %c0_6 = arith.constant 0 : index
    %4 = vector.load %arg4[%c0_4, %c0_5, %c0_6] : memref<1x16x768xf32, #tpu.memory_space<vmem>>, vector<1x16x768xf32>
    %5 = vector.shape_cast %4 : vector<1x16x768xf32> to vector<16x768xf32>
    %6 = vector.shape_cast %3 : vector<16x768xf32> to vector<1x16x768xf32>
    tpu.vector_store %arg4[%c0_4, %c0_5, %c0_6], %6 {strides = array<i32>} : memref<1x16x768xf32, #tpu.memory_space<vmem>>, vector<1x16x768xf32>,
    return
  }
  func.func @transform_0(%arg0: i32, %arg1: i32) -> (i32, i32) {
    %c0_i32 = arith.constant 0 : i32
    %c0_i32_0 = arith.constant 0 : i32
    return %arg1, %c0_i32 : i32, i32
  }
  func.func @transform_1(%arg0: i32, %arg1: i32) -> (i32, i32, i32) {
    %c0_i32 = arith.constant 0 : i32
    %c0_i32_0 = arith.constant 0 : i32
    %c0_i32_1 = arith.constant 0 : i32
    return %arg0, %c0_i32, %c0_i32_0 : i32, i32, i32
  }
  func.func @transform_2(%arg0: i32, %arg1: i32) -> (i32, i32, i32) {
    %c0_i32 = arith.constant 0 : i32
    %c0_i32_0 = arith.constant 0 : i32
    return %arg0, %arg1, %c0_i32 : i32, i32, i32
  }
}

</mosaic_0001>

<llo_original>
// kernel: tpu_custom_call.1
$region0: #{tpu_custom_call.1}
  #allocation0 [shape = 'u32[]', space=smem, size = 0x4, offset = 0x4, fixed_abs, tag = 'smem constant byte address 0x4 - core index']
  #allocation1 [shape = 'u32[144,128]{1,0:T(1,128)}', space=vmem, size = 0x12000, scoped, tag = 'internal scratch']
  %s0 = inlined_call_operand.hbm [shape: bf16[16,768], index: 0, kind: input, shape index: {}]
  %s1 = inlined_call_operand.hbm [shape: bf16[6,768,768], index: 1, kind: input, shape index: {}]
  %s2 = inlined_call_operand.hbm [shape: f32[6,16,768], index: 2, kind: output, shape index: {}]
  %s3 = sld [smem:[#allocation0]]
  $region49: #{tpu_custom_call.1} parent=0
    _
  %s5 = ssub.s32 1, %s3
  %s6 = scalar_select 0, %s5, %s3
  $region1: #{tpu_custom_call.1} parent=0
    #allocation2 [shape = 'u8[24576]{0}', space=vmem, size = 0x6000, scoped, tag = 'input window, operand 0, single buffered']
    #allocation3 [shape = 's32[2]{0}', space=sflag, size = 0x8, scoped, tag = 'scoped memory for tpu_custom_call.1']
    #allocation4 [shape = 's32[2]{0}', space=sflag, size = 0x8, scoped, tag = 'scoped memory for tpu_custom_call.1']
    #allocation5 [shape = 'u8[2359296]{0}', space=vmem, size = 0x240000, scoped, tag = 'input window, operand 1']
    #allocation6 [shape = 's32[2]{0}', space=sflag, size = 0x8, scoped, tag = 'scoped memory for tpu_custom_call.1']
    #allocation7 [shape = 'u8[98304]{0}', space=vmem, size = 0x18000, scoped, tag = 'output window, operand 0']
    %7 = vsyncpa [#allocation3], 0
    %8 = vsyncpa [#allocation6], 0
    %s9 = scalar_lea.sflag [#allocation6], 1
    %10 = vsyncpa %s9, 0
    %11 = vsyncpa [#allocation4], 0
    %s12 = scalar_lea.sflag [#allocation4], 1
    %13 = vsyncpa %s12, 0
    loop: start=0, step=1, limit=8
    $region2: #{tpu_custom_call.1} parent=1 // loop_pre_header
      _
    $region3: #{tpu_custom_call.1} parent=1 // loop_header
      %s15 = sphi 0, %s19
      %p16 = scmp.ge.s32.totalorder %s15, 8
      %s22 = sphi 0, %s34
      %s23 = sphi 0, %s30
      %s24 = sphi 0, %s22
      %s25 = sphi 0, %s23
      %s26 = sphi 0, %s24
      %s27 = sphi 0, %s25
      %s37 = sphi 0, %s39
      %s40 = sphi 0, %s37
      %s41 = sphi 0, %s40
      %s57 = sphi 0, %s41
      %s63 = sphi 0, %s65
      %s66 = sphi 0, %s63
      %s67 = sphi 0, %s66
      %s83 = sphi 0, %s67
      %s91 = sphi 0, %s93
      %s94 = sphi 0, %s91
      %s95 = sphi 0, %s94
      %s111 = sphi 0, %s95
    $region4: #{tpu_custom_call.1} parent=1 // loop_header_branch
      %18 = sbr.rel (%p16) target = $region8
    $region5: #{tpu_custom_call.1} parent=1 // loop_body
      %s20 = ssub.s32 %s15, 1
      %s21 = ssub.s32 %s15, 2
      %s28 = sadd.s32 1, %s23
      %p29 = scmp.ge.s32.totalorder %s28, 1
      %s30 = scalar_select %p29, 0, %s28
      %s31 = sadd.s32 1, %s22
      %s32 = scalar_select %p29, %s31, %s22
      %p33 = scmp.ge.s32.totalorder %s32, 6
      %s34 = scalar_select %p33, 0, %s32
      %s35 = ssub.s32 %s23, %s30
      %p36 = scmp.eq.s32.totalorder %s35, 0
      %s38 = sadd.s32 %s37, 1
      %s39 = scalar_select %p36, %s37, %s38
      %p42 = pneg %p36
      %p43 = scmp.eq.s32.totalorder %s15, 5
      %p44 = por %p42, %p43
      %p45 = scmp.ne.s32.totalorder %s37, %s40
      %p46 = scmp.eq.s32.totalorder %s15, 0
      %p47 = por %p45, %p46
      %p48 = scmp.ne.s32.totalorder %s37, %s40
      %p49 = scmp.eq.s32.totalorder %s20, 5
      %p50 = por %p48, %p49
      %p51 = scmp.ne.s32.totalorder %s40, %s41
      %p52 = scmp.eq.s32.totalorder %s20, 0
      %p53 = por %p51, %p52
      %p54 = scmp.ne.s32.totalorder %s40, %s41
      %p55 = scmp.eq.s32.totalorder %s21, 5
      %p56 = por %p54, %p55
      %p58 = scmp.ne.s32.totalorder %s41, %s57
      %p59 = scmp.eq.s32.totalorder %s21, 0
      %p60 = por %p58, %p59
      %s61 = ssub.s32 %s22, %s34
      %p62 = scmp.eq.s32.totalorder %s61, 0
      %s64 = sadd.s32 %s63, 1
      %s65 = scalar_select %p62, %s63, %s64
      %p68 = pneg %p62
      %p69 = scmp.eq.s32.totalorder %s15, 5
      %p70 = por %p68, %p69
      %p71 = scmp.ne.s32.totalorder %s63, %s66
      %p72 = scmp.eq.s32.totalorder %s15, 0
      %p73 = por %p71, %p72
      %p74 = scmp.ne.s32.totalorder %s63, %s66
      %p75 = scmp.eq.s32.totalorder %s20, 5
      %p76 = por %p74, %p75
      %p77 = scmp.ne.s32.totalorder %s66, %s67
      %p78 = scmp.eq.s32.totalorder %s20, 0
      %p79 = por %p77, %p78
      %p80 = scmp.ne.s32.totalorder %s66, %s67
      %p81 = scmp.eq.s32.totalorder %s21, 5
      %p82 = por %p80, %p81
      %p84 = scmp.ne.s32.totalorder %s67, %s83
      %p85 = scmp.eq.s32.totalorder %s21, 0
      %p86 = por %p84, %p85
      %s87 = ssub.s32 %s22, %s34
      %s88 = ssub.s32 %s23, %s30
      %s89 = sor.u32 %s87, %s88
      %p90 = scmp.eq.s32.totalorder %s89, 0
      %s92 = sadd.s32 %s91, 1
      %s93 = scalar_select %p90, %s91, %s92
      %p96 = pneg %p90
      %p97 = scmp.eq.s32.totalorder %s15, 5
      %p98 = por %p96, %p97
      %p99 = scmp.ne.s32.totalorder %s91, %s94
      %p100 = scmp.eq.s32.totalorder %s15, 0
      %p101 = por %p99, %p100
      %p102 = scmp.ne.s32.totalorder %s91, %s94
      %p103 = scmp.eq.s32.totalorder %s20, 5
      %p104 = por %p102, %p103
      %p105 = scmp.ne.s32.totalorder %s94, %s95
      %p106 = scmp.eq.s32.totalorder %s20, 0
      %p107 = por %p105, %p106
      %p108 = scmp.ne.s32.totalorder %s94, %s95
      %p109 = scmp.eq.s32.totalorder %s21, 5
      %p110 = por %p108, %p109
      %p112 = scmp.ne.s32.totalorder %s95, %s111
      %p113 = scmp.eq.s32.totalorder %s21, 0
      %p114 = por %p112, %p113
      %p115 = scmp.le.s32.totalorder 1, %s15
      %p116 = scmp.lt.s32.totalorder %s15, 7
      %p117 = pnand %p115, %p116
      %p118 = pneg %p117
      // Predicated region
      $region9: #{tpu_custom_call.1} parent=5 // pred_check
        _
      $region10: #{tpu_custom_call.1} parent=5 // pred_check_branch
        %120 = sbr.rel (%p117) target = $region12
      $region11: #{tpu_custom_call.1} parent=5 // pred_region
        %s121 = ssub.s32 %s15, 1
        // Predicated region
        $region13: #{tpu_custom_call.1} parent=11 // pred_check
          %p122 = pneg %p53
        $region14: #{tpu_custom_call.1} parent=11 // pred_check_branch
          %124 = sbr.rel (%p122) target = $region16
        $region15: #{tpu_custom_call.1} parent=11 // pred_region
          %s125 = smul.u32 2, %s25
          %s127 = ssub.s32 768, 768
          %128 = vsyncadd [#allocation3], %s127
          %s129 = smul.addr %s125, 6
          %s130 = smul.addr %s129, 64
          %s131 = scalar_lea.hbm %s0, %s130
          %s132 = sshll.u32 [#allocation2], 4
          %s133 = int_to_ptr.vmem [resolvable:$true] %s132
          %138 = dma.hbm_to_vmem [thread:$0]  %s131, 768, %s133, [#allocation3], 384, 384, 24
        $region16: #{tpu_custom_call.1} parent=11 // pred_fallthru
          _
      $region12: #{tpu_custom_call.1} parent=5 // pred_fallthru
        _
      %p139 = scmp.lt.s32.totalorder %s15, 6
      // Predicated region
      $region17: #{tpu_custom_call.1} parent=5 // pred_check
        %p140 = pneg %p139
      $region18: #{tpu_custom_call.1} parent=5 // pred_check_branch
        %142 = sbr.rel (%p140) target = $region20
      $region19: #{tpu_custom_call.1} parent=5 // pred_region
        // Predicated region
        $region21: #{tpu_custom_call.1} parent=19 // pred_check
          %p143 = pneg %p73
        $region22: #{tpu_custom_call.1} parent=19 // pred_check_branch
          %145 = sbr.rel (%p143) target = $region24
        $region23: #{tpu_custom_call.1} parent=19 // pred_region
          %s146 = sand.u32 %s63, 1
          %s147 = scalar_lea.sflag [#allocation6], %s146
          %s148 = sand.u32 %s63, 1
          %s149 = smul.addr %s148, 2304
          %s150 = scalar_lea.vmem [#allocation5], %s149
          %s152 = ssub.s32 36864, 36864
          %153 = vsyncadd %s147, %s152
          %s154 = smul.addr %s22, 576
          %s155 = smul.addr %s154, 64
          %s156 = scalar_lea.hbm %s1, %s155
          %s157 = sshll.u32 %s150, 4
          %s158 = int_to_ptr.vmem [resolvable:$true] %s157
          %163 = dma.hbm_to_vmem [thread:$0]  %s156, 36864, %s158, %s147, 384, 384, 24
        $region24: #{tpu_custom_call.1} parent=19 // pred_fallthru
          _
      $region20: #{tpu_custom_call.1} parent=5 // pred_fallthru
        _
      %p164 = scmp.le.s32.totalorder 1, %s15
      %p165 = scmp.lt.s32.totalorder %s15, 7
      %p166 = pnand %p164, %p165
      %p167 = pneg %p166
      // Predicated region
      $region25: #{tpu_custom_call.1} parent=5 // pred_check
        _
      $region26: #{tpu_custom_call.1} parent=5 // pred_check_branch
        %169 = sbr.rel (%p166) target = $region28
      $region27: #{tpu_custom_call.1} parent=5 // pred_region
        %s170 = ssub.s32 %s15, 1
        // Predicated region
        $region29: #{tpu_custom_call.1} parent=27 // pred_check
          %p171 = pneg %p53
        $region30: #{tpu_custom_call.1} parent=27 // pred_check_branch
          %173 = sbr.rel (%p171) target = $region32
        $region31: #{tpu_custom_call.1} parent=27 // pred_region
          %174 = dma.done [#allocation3], 768
        $region32: #{tpu_custom_call.1} parent=27 // pred_fallthru
          _
        %s175 = sand.u32 %s66, 1
        %s176 = scalar_lea.sflag [#allocation6], %s175
        %s177 = sand.u32 %s66, 1
        %s178 = smul.addr %s177, 2304
        %s179 = scalar_lea.vmem [#allocation5], %s178
        // Predicated region
        $region33: #{tpu_custom_call.1} parent=27 // pred_check
          %p180 = pneg %p79
        $region34: #{tpu_custom_call.1} parent=27 // pred_check_branch
          %182 = sbr.rel (%p180) target = $region36
        $region35: #{tpu_custom_call.1} parent=27 // pred_region
          %183 = dma.done %s176, 36864
        $region36: #{tpu_custom_call.1} parent=27 // pred_fallthru
          _
        %p184 = pneg %p53
        %p185 = pneg %p50
        %s186 = sand.u32 %s66, 1
        %s187 = scalar_lea.sflag [#allocation6], %s186
        %s188 = sand.u32 %s66, 1
        %s189 = smul.addr %s188, 2304
        %s190 = scalar_lea.vmem [#allocation5], %s189
        %p191 = pneg %p79
        %p192 = pneg %p76
        %p193 = pneg %p107
        %p194 = pneg %p104
        %s195 = sand.u32 %s94, 1
        %s196 = scalar_lea.sflag [#allocation4], %s195
        %s197 = sand.u32 %s94, 1
        %s198 = smul.addr %s197, 96
        %s199 = scalar_lea.vmem [#allocation7], %s198
        %s200 = smul.u32 2, %s25
        %s201 = smul.u32 2, %s25
        %v202 = vld [vmem:[#allocation2] sm:$0xff]
        %v203 = vld [vmem:[#allocation2 + $0x8] sm:$0xff]
        %v204 = vld [vmem:[#allocation2 + $0x10] sm:$0xff]
        %v205 = vld [vmem:[#allocation2 + $0x18] sm:$0xff]
        %v206 = vld [vmem:[#allocation2 + $0x20] sm:$0xff]
        %v207 = vld [vmem:[#allocation2 + $0x28] sm:$0xff]
        %v208 = vld [vmem:[%s179] sm:$0xff]
        %v209 = vld [vmem:[%s179 + $0x8] sm:$0xff]
        %v210 = vld [vmem:[%s179 + $0x10] sm:$0xff]
        %v211 = vld [vmem:[%s179 + $0x18] sm:$0xff]
        %v212 = vld [vmem:[%s179 + $0x20] sm:$0xff]
        %v213 = vld [vmem:[%s179 + $0x28] sm:$0xff]
        %v214 = vld [vmem:[%s179 + $0x30] sm:$0xff]
        %v215 = vld [vmem:[%s179 + $0x38] sm:$0xff]
        %v216 = vld [vmem:[%s179 + $0x40] sm:$0xff]
        %v217 = vld [vmem:[%s179 + $0x48] sm:$0xff]
        %v218 = vld [vmem:[%s179 + $0x50] sm:$0xff]
        %v219 = vld [vmem:[%s179 + $0x58] sm:$0xff]
        %v220 = vld [vmem:[%s179 + $0x60] sm:$0xff]
        %v221 = vld [vmem:[%s179 + $0x68] sm:$0xff]
        %v222 = vld [vmem:[%s179 + $0x70] sm:$0xff]
        %v223 = vld [vmem:[%s179 + $0x78] sm:$0xff]
        %v224 = vld [vmem:[%s179 + $0x80] sm:$0xff]
        %v225 = vld [vmem:[%s179 + $0x88] sm:$0xff]
        %v226 = vld [vmem:[%s179 + $0x90] sm:$0xff]
        %v227 = vld [vmem:[%s179 + $0x98] sm:$0xff]
        %v228 = vld [vmem:[%s179 + $0xa0] sm:$0xff]
        %v229 = vld [vmem:[%s179 + $0xa8] sm:$0xff]
        %v230 = vld [vmem:[%s179 + $0xb0] sm:$0xff]
        %v231 = vld [vmem:[%s179 + $0xb8] sm:$0xff]
        %v232 = vld [vmem:[%s179 + $0xc0] sm:$0xff]
        %v233 = vld [vmem:[%s179 + $0xc8] sm:$0xff]
        %v234 = vld [vmem:[%s179 + $0xd0] sm:$0xff]
        %v235 = vld [vmem:[%s179 + $0xd8] sm:$0xff]
        %v236 = vld [vmem:[%s179 + $0xe0] sm:$0xff]
        %v237 = vld [vmem:[%s179 + $0xe8] sm:$0xff]
        %v238 = vld [vmem:[%s179 + $0xf0] sm:$0xff]
        %v239 = vld [vmem:[%s179 + $0xf8] sm:$0xff]
        %v240 = vld [vmem:[%s179 + $0x100] sm:$0xff]
        %v241 = vld [vmem:[%s179 + $0x108] sm:$0xff]
        %v242 = vld [vmem:[%s179 + $0x110] sm:$0xff]
        %v243 = vld [vmem:[%s179 + $0x118] sm:$0xff]
        %v244 = vld [vmem:[%s179 + $0x120] sm:$0xff]
        %v245 = vld [vmem:[%s179 + $0x128] sm:$0xff]
        %v246 = vld [vmem:[%s179 + $0x130] sm:$0xff]
        %v247 = vld [vmem:[%s179 + $0x138] sm:$0xff]
        %v248 = vld [vmem:[%s179 + $0x140] sm:$0xff]
        %v249 = vld [vmem:[%s179 + $0x148] sm:$0xff]
        %v250 = vld [vmem:[%s179 + $0x150] sm:$0xff]
        %v251 = vld [vmem:[%s179 + $0x158] sm:$0xff]
        %v252 = vld [vmem:[%s179 + $0x160] sm:$0xff]
        %v253 = vld [vmem:[%s179 + $0x168] sm:$0xff]
        %v254 = vld [vmem:[%s179 + $0x170] sm:$0xff]
        %v255 = vld [vmem:[%s179 + $0x178] sm:$0xff]
        %v256 = vld [vmem:[%s179 + $0x180] sm:$0xff]
        %v257 = vld [vmem:[%s179 + $0x188] sm:$0xff]
        %v258 = vld [vmem:[%s179 + $0x190] sm:$0xff]
        %v259 = vld [vmem:[%s179 + $0x198] sm:$0xff]
        %v260 = vld [vmem:[%s179 + $0x1a0] sm:$0xff]
        %v261 = vld [vmem:[%s179 + $0x1a8] sm:$0xff]
        %v262 = vld [vmem:[%s179 + $0x1b0] sm:$0xff]
        %v263 = vld [vmem:[%s179 + $0x1b8] sm:$0xff]
        %v264 = vld [vmem:[%s179 + $0x1c0] sm:$0xff]
        %v265 = vld [vmem:[%s179 + $0x1c8] sm:$0xff]
        %v266 = vld [vmem:[%s179 + $0x1d0] sm:$0xff]
        %v267 = vld [vmem:[%s179 + $0x1d8] sm:$0xff]
        %v268 = vld [vmem:[%s179 + $0x1e0] sm:$0xff]
        %v269 = vld [vmem:[%s179 + $0x1e8] sm:$0xff]
        %v270 = vld [vmem:[%s179 + $0x1f0] sm:$0xff]
        %v271 = vld [vmem:[%s179 + $0x1f8] sm:$0xff]
        %v272 = vld [vmem:[%s179 + $0x200] sm:$0xff]
        %v273 = vld [vmem:[%s179 + $0x208] sm:$0xff]
        %v274 = vld [vmem:[%s179 + $0x210] sm:$0xff]
        %v275 = vld [vmem:[%s179 + $0x218] sm:$0xff]
        %v276 = vld [vmem:[%s179 + $0x220] sm:$0xff]
        %v277 = vld [vmem:[%s179 + $0x228] sm:$0xff]
        %v278 = vld [vmem:[%s179 + $0x230] sm:$0xff]
        %v279 = vld [vmem:[%s179 + $0x238] sm:$0xff]
        %v280 = vld [vmem:[%s179 + $0x240] sm:$0xff]
        %v281 = vld [vmem:[%s179 + $0x248] sm:$0xff]
        %v282 = vld [vmem:[%s179 + $0x250] sm:$0xff]
        %v283 = vld [vmem:[%s179 + $0x258] sm:$0xff]
        %v284 = vld [vmem:[%s179 + $0x260] sm:$0xff]
        %v285 = vld [vmem:[%s179 + $0x268] sm:$0xff]
        %v286 = vld [vmem:[%s179 + $0x270] sm:$0xff]
        %v287 = vld [vmem:[%s179 + $0x278] sm:$0xff]
        %v288 = vld [vmem:[%s179 + $0x280] sm:$0xff]
        %v289 = vld [vmem:[%s179 + $0x288] sm:$0xff]
        %v290 = vld [vmem:[%s179 + $0x290] sm:$0xff]
        %v291 = vld [vmem:[%s179 + $0x298] sm:$0xff]
        %v292 = vld [vmem:[%s179 + $0x2a0] sm:$0xff]
        %v293 = vld [vmem:[%s179 + $0x2a8] sm:$0xff]
        %v294 = vld [vmem:[%s179 + $0x2b0] sm:$0xff]
        %v295 = vld [vmem:[%s179 + $0x2b8] sm:$0xff]
        %v296 = vld [vmem:[%s179 + $0x2c0] sm:$0xff]
        %v297 = vld [vmem:[%s179 + $0x2c8] sm:$0xff]
        %v298 = vld [vmem:[%s179 + $0x2d0] sm:$0xff]
        %v299 = vld [vmem:[%s179 + $0x2d8] sm:$0xff]
        %v300 = vld [vmem:[%s179 + $0x2e0] sm:$0xff]
        %v301 = vld [vmem:[%s179 + $0x2e8] sm:$0xff]
        %v302 = vld [vmem:[%s179 + $0x2f0] sm:$0xff]
        %v303 = vld [vmem:[%s179 + $0x2f8] sm:$0xff]
        %v304 = vld [vmem:[%s179 + $0x300] sm:$0xff]
        %v305 = vld [vmem:[%s179 + $0x308] sm:$0xff]
        %v306 = vld [vmem:[%s179 + $0x310] sm:$0xff]
        %v307 = vld [vmem:[%s179 + $0x318] sm:$0xff]
        %v308 = vld [vmem:[%s179 + $0x320] sm:$0xff]
        %v309 = vld [vmem:[%s179 + $0x328] sm:$0xff]
        %v310 = vld [vmem:[%s179 + $0x330] sm:$0xff]
        %v311 = vld [vmem:[%s179 + $0x338] sm:$0xff]
        %v312 = vld [vmem:[%s179 + $0x340] sm:$0xff]
        %v313 = vld [vmem:[%s179 + $0x348] sm:$0xff]
        %v314 = vld [vmem:[%s179 + $0x350] sm:$0xff]
        %v315 = vld [vmem:[%s179 + $0x358] sm:$0xff]
        %v316 = vld [vmem:[%s179 + $0x360] sm:$0xff]
        %v317 = vld [vmem:[%s179 + $0x368] sm:$0xff]
        %v318 = vld [vmem:[%s179 + $0x370] sm:$0xff]
        %v319 = vld [vmem:[%s179 + $0x378] sm:$0xff]
        %v320 = vld [vmem:[%s179 + $0x380] sm:$0xff]
        %v321 = vld [vmem:[%s179 + $0x388] sm:$0xff]
        %v322 = vld [vmem:[%s179 + $0x390] sm:$0xff]
        %v323 = vld [vmem:[%s179 + $0x398] sm:$0xff]
        %v324 = vld [vmem:[%s179 + $0x3a0] sm:$0xff]
        %v325 = vld [vmem:[%s179 + $0x3a8] sm:$0xff]
        %v326 = vld [vmem:[%s179 + $0x3b0] sm:$0xff]
        %v327 = vld [vmem:[%s179 + $0x3b8] sm:$0xff]
        %v328 = vld [vmem:[%s179 + $0x3c0] sm:$0xff]
        %v329 = vld [vmem:[%s179 + $0x3c8] sm:$0xff]
        %v330 = vld [vmem:[%s179 + $0x3d0] sm:$0xff]
        %v331 = vld [vmem:[%s179 + $0x3d8] sm:$0xff]
        %v332 = vld [vmem:[%s179 + $0x3e0] sm:$0xff]
        %v333 = vld [vmem:[%s179 + $0x3e8] sm:$0xff]
        %v334 = vld [vmem:[%s179 + $0x3f0] sm:$0xff]
        %v335 = vld [vmem:[%s179 + $0x3f8] sm:$0xff]
        %v336 = vld [vmem:[%s179 + $0x400] sm:$0xff]
        %v337 = vld [vmem:[%s179 + $0x408] sm:$0xff]
        %v338 = vld [vmem:[%s179 + $0x410] sm:$0xff]
        %v339 = vld [vmem:[%s179 + $0x418] sm:$0xff]
        %v340 = vld [vmem:[%s179 + $0x420] sm:$0xff]
        %v341 = vld [vmem:[%s179 + $0x428] sm:$0xff]
        %v342 = vld [vmem:[%s179 + $0x430] sm:$0xff]
        %v343 = vld [vmem:[%s179 + $0x438] sm:$0xff]
        %v344 = vld [vmem:[%s179 + $0x440] sm:$0xff]
        %v345 = vld [vmem:[%s179 + $0x448] sm:$0xff]
        %v346 = vld [vmem:[%s179 + $0x450] sm:$0xff]
        %v347 = vld [vmem:[%s179 + $0x458] sm:$0xff]
        %v348 = vld [vmem:[%s179 + $0x460] sm:$0xff]
        %v349 = vld [vmem:[%s179 + $0x468] sm:$0xff]
        %v350 = vld [vmem:[%s179 + $0x470] sm:$0xff]
        %v351 = vld [vmem:[%s179 + $0x478] sm:$0xff]
        %v352 = vld [vmem:[%s179 + $0x480] sm:$0xff]
        %v353 = vld [vmem:[%s179 + $0x488] sm:$0xff]
        %v354 = vld [vmem:[%s179 + $0x490] sm:$0xff]
        %v355 = vld [vmem:[%s179 + $0x498] sm:$0xff]
        %v356 = vld [vmem:[%s179 + $0x4a0] sm:$0xff]
        %v357 = vld [vmem:[%s179 + $0x4a8] sm:$0xff]
        %v358 = vld [vmem:[%s179 + $0x4b0] sm:$0xff]
        %v359 = vld [vmem:[%s179 + $0x4b8] sm:$0xff]
        %v360 = vld [vmem:[%s179 + $0x4c0] sm:$0xff]
        %v361 = vld [vmem:[%s179 + $0x4c8] sm:$0xff]
        %v362 = vld [vmem:[%s179 + $0x4d0] sm:$0xff]
        %v363 = vld [vmem:[%s179 + $0x4d8] sm:$0xff]
        %v364 = vld [vmem:[%s179 + $0x4e0] sm:$0xff]
        %v365 = vld [vmem:[%s179 + $0x4e8] sm:$0xff]
        %v366 = vld [vmem:[%s179 + $0x4f0] sm:$0xff]
        %v367 = vld [vmem:[%s179 + $0x4f8] sm:$0xff]
        %v368 = vld [vmem:[%s179 + $0x500] sm:$0xff]
        %v369 = vld [vmem:[%s179 + $0x508] sm:$0xff]
        %v370 = vld [vmem:[%s179 + $0x510] sm:$0xff]
        %v371 = vld [vmem:[%s179 + $0x518] sm:$0xff]
        %v372 = vld [vmem:[%s179 + $0x520] sm:$0xff]
        %v373 = vld [vmem:[%s179 + $0x528] sm:$0xff]
        %v374 = vld [vmem:[%s179 + $0x530] sm:$0xff]
        %v375 = vld [vmem:[%s179 + $0x538] sm:$0xff]
        %v376 = vld [vmem:[%s179 + $0x540] sm:$0xff]
        %v377 = vld [vmem:[%s179 + $0x548] sm:$0xff]
        %v378 = vld [vmem:[%s179 + $0x550] sm:$0xff]
        %v379 = vld [vmem:[%s179 + $0x558] sm:$0xff]
        %v380 = vld [vmem:[%s179 + $0x560] sm:$0xff]
        %v381 = vld [vmem:[%s179 + $0x568] sm:$0xff]
        %v382 = vld [vmem:[%s179 + $0x570] sm:$0xff]
        %v383 = vld [vmem:[%s179 + $0x578] sm:$0xff]
        %v384 = vld [vmem:[%s179 + $0x580] sm:$0xff]
        %v385 = vld [vmem:[%s179 + $0x588] sm:$0xff]
        %v386 = vld [vmem:[%s179 + $0x590] sm:$0xff]
        %v387 = vld [vmem:[%s179 + $0x598] sm:$0xff]
        %v388 = vld [vmem:[%s179 + $0x5a0] sm:$0xff]
        %v389 = vld [vmem:[%s179 + $0x5a8] sm:$0xff]
        %v390 = vld [vmem:[%s179 + $0x5b0] sm:$0xff]
        %v391 = vld [vmem:[%s179 + $0x5b8] sm:$0xff]
        %v392 = vld [vmem:[%s179 + $0x5c0] sm:$0xff]
        %v393 = vld [vmem:[%s179 + $0x5c8] sm:$0xff]
        %v394 = vld [vmem:[%s179 + $0x5d0] sm:$0xff]
        %v395 = vld [vmem:[%s179 + $0x5d8] sm:$0xff]
        %v396 = vld [vmem:[%s179 + $0x5e0] sm:$0xff]
        %v397 = vld [vmem:[%s179 + $0x5e8] sm:$0xff]
        %v398 = vld [vmem:[%s179 + $0x5f0] sm:$0xff]
        %v399 = vld [vmem:[%s179 + $0x5f8] sm:$0xff]
        %v400 = vld [vmem:[%s179 + $0x600] sm:$0xff]
        %v401 = vld [vmem:[%s179 + $0x608] sm:$0xff]
        %v402 = vld [vmem:[%s179 + $0x610] sm:$0xff]
        %v403 = vld [vmem:[%s179 + $0x618] sm:$0xff]
        %v404 = vld [vmem:[%s179 + $0x620] sm:$0xff]
        %v405 = vld [vmem:[%s179 + $0x628] sm:$0xff]
        %v406 = vld [vmem:[%s179 + $0x630] sm:$0xff]
        %v407 = vld [vmem:[%s179 + $0x638] sm:$0xff]
        %v408 = vld [vmem:[%s179 + $0x640] sm:$0xff]
        %v409 = vld [vmem:[%s179 + $0x648] sm:$0xff]
        %v410 = vld [vmem:[%s179 + $0x650] sm:$0xff]
        %v411 = vld [vmem:[%s179 + $0x658] sm:$0xff]
        %v412 = vld [vmem:[%s179 + $0x660] sm:$0xff]
        %v413 = vld [vmem:[%s179 + $0x668] sm:$0xff]
        %v414 = vld [vmem:[%s179 + $0x670] sm:$0xff]
        %v415 = vld [vmem:[%s179 + $0x678] sm:$0xff]
        %v416 = vld [vmem:[%s179 + $0x680] sm:$0xff]
        %v417 = vld [vmem:[%s179 + $0x688] sm:$0xff]
        %v418 = vld [vmem:[%s179 + $0x690] sm:$0xff]
        %v419 = vld [vmem:[%s179 + $0x698] sm:$0xff]
        %v420 = vld [vmem:[%s179 + $0x6a0] sm:$0xff]
        %v421 = vld [vmem:[%s179 + $0x6a8] sm:$0xff]
        %v422 = vld [vmem:[%s179 + $0x6b0] sm:$0xff]
        %v423 = vld [vmem:[%s179 + $0x6b8] sm:$0xff]
        %v424 = vld [vmem:[%s179 + $0x6c0] sm:$0xff]
        %v425 = vld [vmem:[%s179 + $0x6c8] sm:$0xff]
        %v426 = vld [vmem:[%s179 + $0x6d0] sm:$0xff]
        %v427 = vld [vmem:[%s179 + $0x6d8] sm:$0xff]
        %v428 = vld [vmem:[%s179 + $0x6e0] sm:$0xff]
        %v429 = vld [vmem:[%s179 + $0x6e8] sm:$0xff]
        %v430 = vld [vmem:[%s179 + $0x6f0] sm:$0xff]
        %v431 = vld [vmem:[%s179 + $0x6f8] sm:$0xff]
        %v432 = vld [vmem:[%s179 + $0x700] sm:$0xff]
        %v433 = vld [vmem:[%s179 + $0x708] sm:$0xff]
        %v434 = vld [vmem:[%s179 + $0x710] sm:$0xff]
        %v435 = vld [vmem:[%s179 + $0x718] sm:$0xff]
        %v436 = vld [vmem:[%s179 + $0x720] sm:$0xff]
        %v437 = vld [vmem:[%s179 + $0x728] sm:$0xff]
        %v438 = vld [vmem:[%s179 + $0x730] sm:$0xff]
        %v439 = vld [vmem:[%s179 + $0x738] sm:$0xff]
        %v440 = vld [vmem:[%s179 + $0x740] sm:$0xff]
        %v441 = vld [vmem:[%s179 + $0x748] sm:$0xff]
        %v442 = vld [vmem:[%s179 + $0x750] sm:$0xff]
        %v443 = vld [vmem:[%s179 + $0x758] sm:$0xff]
        %v444 = vld [vmem:[%s179 + $0x760] sm:$0xff]
        %v445 = vld [vmem:[%s179 + $0x768] sm:$0xff]
        %v446 = vld [vmem:[%s179 + $0x770] sm:$0xff]
        %v447 = vld [vmem:[%s179 + $0x778] sm:$0xff]
        %v448 = vld [vmem:[%s179 + $0x780] sm:$0xff]
        %v449 = vld [vmem:[%s179 + $0x788] sm:$0xff]
        %v450 = vld [vmem:[%s179 + $0x790] sm:$0xff]
        %v451 = vld [vmem:[%s179 + $0x798] sm:$0xff]
        %v452 = vld [vmem:[%s179 + $0x7a0] sm:$0xff]
        %v453 = vld [vmem:[%s179 + $0x7a8] sm:$0xff]
        %v454 = vld [vmem:[%s179 + $0x7b0] sm:$0xff]
        %v455 = vld [vmem:[%s179 + $0x7b8] sm:$0xff]
        %v456 = vld [vmem:[%s179 + $0x7c0] sm:$0xff]
        %v457 = vld [vmem:[%s179 + $0x7c8] sm:$0xff]
        %v458 = vld [vmem:[%s179 + $0x7d0] sm:$0xff]
        %v459 = vld [vmem:[%s179 + $0x7d8] sm:$0xff]
        %v460 = vld [vmem:[%s179 + $0x7e0] sm:$0xff]
        %v461 = vld [vmem:[%s179 + $0x7e8] sm:$0xff]
        %v462 = vld [vmem:[%s179 + $0x7f0] sm:$0xff]
        %v463 = vld [vmem:[%s179 + $0x7f8] sm:$0xff]
        %v464 = vld [vmem:[%s179 + $0x800] sm:$0xff]
        %v465 = vld [vmem:[%s179 + $0x808] sm:$0xff]
        %v466 = vld [vmem:[%s179 + $0x810] sm:$0xff]
        %v467 = vld [vmem:[%s179 + $0x818] sm:$0xff]
        %v468 = vld [vmem:[%s179 + $0x820] sm:$0xff]
        %v469 = vld [vmem:[%s179 + $0x828] sm:$0xff]
        %v470 = vld [vmem:[%s179 + $0x830] sm:$0xff]
        %v471 = vld [vmem:[%s179 + $0x838] sm:$0xff]
        %v472 = vld [vmem:[%s179 + $0x840] sm:$0xff]
        %v473 = vld [vmem:[%s179 + $0x848] sm:$0xff]
        %v474 = vld [vmem:[%s179 + $0x850] sm:$0xff]
        %v475 = vld [vmem:[%s179 + $0x858] sm:$0xff]
        %v476 = vld [vmem:[%s179 + $0x860] sm:$0xff]
        %v477 = vld [vmem:[%s179 + $0x868] sm:$0xff]
        %v478 = vld [vmem:[%s179 + $0x870] sm:$0xff]
        %v479 = vld [vmem:[%s179 + $0x878] sm:$0xff]
        %v480 = vld [vmem:[%s179 + $0x880] sm:$0xff]
        %v481 = vld [vmem:[%s179 + $0x888] sm:$0xff]
        %v482 = vld [vmem:[%s179 + $0x890] sm:$0xff]
        %v483 = vld [vmem:[%s179 + $0x898] sm:$0xff]
        %v484 = vld [vmem:[%s179 + $0x8a0] sm:$0xff]
        %v485 = vld [vmem:[%s179 + $0x8a8] sm:$0xff]
        %v486 = vld [vmem:[%s179 + $0x8b0] sm:$0xff]
        %v487 = vld [vmem:[%s179 + $0x8b8] sm:$0xff]
        %v488 = vld [vmem:[%s179 + $0x8c0] sm:$0xff]
        %v489 = vld [vmem:[%s179 + $0x8c8] sm:$0xff]
        %v490 = vld [vmem:[%s179 + $0x8d0] sm:$0xff]
        %v491 = vld [vmem:[%s179 + $0x8d8] sm:$0xff]
        %v492 = vld [vmem:[%s179 + $0x8e0] sm:$0xff]
        %v493 = vld [vmem:[%s179 + $0x8e8] sm:$0xff]
        %v494 = vld [vmem:[%s179 + $0x8f0] sm:$0xff]
        %v495 = vld [vmem:[%s179 + $0x8f8] sm:$0xff]
        %v502 = vunpack.c.l.b16 %v202
        %v503 = vunpack.c.h.b16 %v202
        %v504 = vunpack.c.l.b16 %v203
        %v505 = vunpack.c.h.b16 %v203
        %v506 = vunpack.c.l.b16 %v204
        %v507 = vunpack.c.h.b16 %v204
        %v508 = vunpack.c.l.b16 %v205
        %v509 = vunpack.c.h.b16 %v205
        %v510 = vunpack.c.l.b16 %v206
        %v511 = vunpack.c.h.b16 %v206
        %v512 = vunpack.c.l.b16 %v207
        %v513 = vunpack.c.h.b16 %v207
        %v514 = vpack.c.b16 %v508, %v502
        %v515 = vpack.c.b16 %v509, %v503
        %v516 = vpack.c.b16 %v510, %v504
        %v517 = vpack.c.b16 %v511, %v505
        %v518 = vpack.c.b16 %v512, %v506
        %v519 = vpack.c.b16 %v513, %v507
        %v814 = vunpack.c.l.b16 %v208
        %v815 = vunpack.c.h.b16 %v208
        %v816 = vunpack.c.l.b16 %v209
        %v817 = vunpack.c.h.b16 %v209
        %v818 = vunpack.c.l.b16 %v210
        %v819 = vunpack.c.h.b16 %v210
        %v820 = vunpack.c.l.b16 %v211
        %v821 = vunpack.c.h.b16 %v211
        %v822 = vunpack.c.l.b16 %v212
        %v823 = vunpack.c.h.b16 %v212
        %v824 = vunpack.c.l.b16 %v213
        %v825 = vunpack.c.h.b16 %v213
        %v826 = vunpack.c.l.b16 %v214
        %v827 = vunpack.c.h.b16 %v214
        %v828 = vunpack.c.l.b16 %v215
        %v829 = vunpack.c.h.b16 %v215
        %v830 = vunpack.c.l.b16 %v216
        %v831 = vunpack.c.h.b16 %v216
        %v832 = vunpack.c.l.b16 %v217
        %v833 = vunpack.c.h.b16 %v217
        %v834 = vunpack.c.l.b16 %v218
        %v835 = vunpack.c.h.b16 %v218
        %v836 = vunpack.c.l.b16 %v219
        %v837 = vunpack.c.h.b16 %v219
        %v838 = vunpack.c.l.b16 %v220
        %v839 = vunpack.c.h.b16 %v220
        %v840 = vunpack.c.l.b16 %v221
        %v841 = vunpack.c.h.b16 %v221
        %v842 = vunpack.c.l.b16 %v222
        %v843 = vunpack.c.h.b16 %v222
        %v844 = vunpack.c.l.b16 %v223
        %v845 = vunpack.c.h.b16 %v223
        %v846 = vunpack.c.l.b16 %v224
        %v847 = vunpack.c.h.b16 %v224
        %v848 = vunpack.c.l.b16 %v225
        %v849 = vunpack.c.h.b16 %v225
        %v850 = vunpack.c.l.b16 %v226
        %v851 = vunpack.c.h.b16 %v226
        %v852 = vunpack.c.l.b16 %v227
        %v853 = vunpack.c.h.b16 %v227
        %v854 = vunpack.c.l.b16 %v228
        %v855 = vunpack.c.h.b16 %v228
        %v856 = vunpack.c.l.b16 %v229
        %v857 = vunpack.c.h.b16 %v229
        %v858 = vunpack.c.l.b16 %v230
        %v859 = vunpack.c.h.b16 %v230
        %v860 = vunpack.c.l.b16 %v231
        %v861 = vunpack.c.h.b16 %v231
        %v862 = vunpack.c.l.b16 %v232
        %v863 = vunpack.c.h.b16 %v232
        %v864 = vunpack.c.l.b16 %v233
        %v865 = vunpack.c.h.b16 %v233
        %v866 = vunpack.c.l.b16 %v234
        %v867 = vunpack.c.h.b16 %v234
        %v868 = vunpack.c.l.b16 %v235
        %v869 = vunpack.c.h.b16 %v235
        %v870 = vunpack.c.l.b16 %v236
        %v871 = vunpack.c.h.b16 %v236
        %v872 = vunpack.c.l.b16 %v237
        %v873 = vunpack.c.h.b16 %v237
        %v874 = vunpack.c.l.b16 %v238
        %v875 = vunpack.c.h.b16 %v238
        %v876 = vunpack.c.l.b16 %v239
        %v877 = vunpack.c.h.b16 %v239
        %v878 = vunpack.c.l.b16 %v240
        %v879 = vunpack.c.h.b16 %v240
        %v880 = vunpack.c.l.b16 %v241
        %v881 = vunpack.c.h.b16 %v241
        %v882 = vunpack.c.l.b16 %v242
        %v883 = vunpack.c.h.b16 %v242
        %v884 = vunpack.c.l.b16 %v243
        %v885 = vunpack.c.h.b16 %v243
        %v886 = vunpack.c.l.b16 %v244
        %v887 = vunpack.c.h.b16 %v244
        %v888 = vunpack.c.l.b16 %v245
        %v889 = vunpack.c.h.b16 %v245
        %v890 = vunpack.c.l.b16 %v246
        %v891 = vunpack.c.h.b16 %v246
        %v892 = vunpack.c.l.b16 %v247
        %v893 = vunpack.c.h.b16 %v247
        %v894 = vunpack.c.l.b16 %v248
        %v895 = vunpack.c.h.b16 %v248
        %v896 = vunpack.c.l.b16 %v249
        %v897 = vunpack.c.h.b16 %v249
        %v898 = vunpack.c.l.b16 %v250
        %v899 = vunpack.c.h.b16 %v250
        %v900 = vunpack.c.l.b16 %v251
        %v901 = vunpack.c.h.b16 %v251
        %v902 = vunpack.c.l.b16 %v252
        %v903 = vunpack.c.h.b16 %v252
        %v904 = vunpack.c.l.b16 %v253
        %v905 = vunpack.c.h.b16 %v253
        %v906 = vunpack.c.l.b16 %v254
        %v907 = vunpack.c.h.b16 %v254
        %v908 = vunpack.c.l.b16 %v255
        %v909 = vunpack.c.h.b16 %v255
        %v910 = vunpack.c.l.b16 %v256
        %v911 = vunpack.c.h.b16 %v256
        %v912 = vunpack.c.l.b16 %v257
        %v913 = vunpack.c.h.b16 %v257
        %v914 = vunpack.c.l.b16 %v258
        %v915 = vunpack.c.h.b16 %v258
        %v916 = vunpack.c.l.b16 %v259
        %v917 = vunpack.c.h.b16 %v259
        %v918 = vunpack.c.l.b16 %v260
        %v919 = vunpack.c.h.b16 %v260
        %v920 = vunpack.c.l.b16 %v261
        %v921 = vunpack.c.h.b16 %v261
        %v922 = vunpack.c.l.b16 %v262
        %v923 = vunpack.c.h.b16 %v262
        %v924 = vunpack.c.l.b16 %v263
        %v925 = vunpack.c.h.b16 %v263
        %v926 = vunpack.c.l.b16 %v264
        %v927 = vunpack.c.h.b16 %v264
        %v928 = vunpack.c.l.b16 %v265
        %v929 = vunpack.c.h.b16 %v265
        %v930 = vunpack.c.l.b16 %v266
        %v931 = vunpack.c.h.b16 %v266
        %v932 = vunpack.c.l.b16 %v267
        %v933 = vunpack.c.h.b16 %v267
        %v934 = vunpack.c.l.b16 %v268
        %v935 = vunpack.c.h.b16 %v268
        %v936 = vunpack.c.l.b16 %v269
        %v937 = vunpack.c.h.b16 %v269
        %v938 = vunpack.c.l.b16 %v270
        %v939 = vunpack.c.h.b16 %v270
        %v940 = vunpack.c.l.b16 %v271
        %v941 = vunpack.c.h.b16 %v271
        %v942 = vunpack.c.l.b16 %v272
        %v943 = vunpack.c.h.b16 %v272
        %v944 = vunpack.c.l.b16 %v273
        %v945 = vunpack.c.h.b16 %v273
        %v946 = vunpack.c.l.b16 %v274
        %v947 = vunpack.c.h.b16 %v274
        %v948 = vunpack.c.l.b16 %v275
        %v949 = vunpack.c.h.b16 %v275
        %v950 = vunpack.c.l.b16 %v276
        %v951 = vunpack.c.h.b16 %v276
        %v952 = vunpack.c.l.b16 %v277
        %v953 = vunpack.c.h.b16 %v277
        %v954 = vunpack.c.l.b16 %v278
        %v955 = vunpack.c.h.b16 %v278
        %v956 = vunpack.c.l.b16 %v279
        %v957 = vunpack.c.h.b16 %v279
        %v958 = vunpack.c.l.b16 %v280
        %v959 = vunpack.c.h.b16 %v280
        %v960 = vunpack.c.l.b16 %v281
        %v961 = vunpack.c.h.b16 %v281
        %v962 = vunpack.c.l.b16 %v282
        %v963 = vunpack.c.h.b16 %v282
        %v964 = vunpack.c.l.b16 %v283
        %v965 = vunpack.c.h.b16 %v283
        %v966 = vunpack.c.l.b16 %v284
        %v967 = vunpack.c.h.b16 %v284
        %v968 = vunpack.c.l.b16 %v285
        %v969 = vunpack.c.h.b16 %v285
        %v970 = vunpack.c.l.b16 %v286
        %v971 = vunpack.c.h.b16 %v286
        %v972 = vunpack.c.l.b16 %v287
        %v973 = vunpack.c.h.b16 %v287
        %v974 = vunpack.c.l.b16 %v288
        %v975 = vunpack.c.h.b16 %v288
        %v976 = vunpack.c.l.b16 %v289
        %v977 = vunpack.c.h.b16 %v289
        %v978 = vunpack.c.l.b16 %v290
        %v979 = vunpack.c.h.b16 %v290
        %v980 = vunpack.c.l.b16 %v291
        %v981 = vunpack.c.h.b16 %v291
        %v982 = vunpack.c.l.b16 %v292
        %v983 = vunpack.c.h.b16 %v292
        %v984 = vunpack.c.l.b16 %v293
        %v985 = vunpack.c.h.b16 %v293
        %v986 = vunpack.c.l.b16 %v294
        %v987 = vunpack.c.h.b16 %v294
        %v988 = vunpack.c.l.b16 %v295
        %v989 = vunpack.c.h.b16 %v295
        %v990 = vunpack.c.l.b16 %v296
        %v991 = vunpack.c.h.b16 %v296
        %v992 = vunpack.c.l.b16 %v297
        %v993 = vunpack.c.h.b16 %v297
        %v994 = vunpack.c.l.b16 %v298
        %v995 = vunpack.c.h.b16 %v298
        %v996 = vunpack.c.l.b16 %v299
        %v997 = vunpack.c.h.b16 %v299
        %v998 = vunpack.c.l.b16 %v300
        %v999 = vunpack.c.h.b16 %v300
        %v1000 = vunpack.c.l.b16 %v301
        %v1001 = vunpack.c.h.b16 %v301
        %v1002 = vunpack.c.l.b16 %v302
        %v1003 = vunpack.c.h.b16 %v302
        %v1004 = vunpack.c.l.b16 %v303
        %v1005 = vunpack.c.h.b16 %v303
        %v1006 = vunpack.c.l.b16 %v304
        %v1007 = vunpack.c.h.b16 %v304
        %v1008 = vunpack.c.l.b16 %v305
        %v1009 = vunpack.c.h.b16 %v305
        %v1010 = vunpack.c.l.b16 %v306
        %v1011 = vunpack.c.h.b16 %v306
        %v1012 = vunpack.c.l.b16 %v307
        %v1013 = vunpack.c.h.b16 %v307
        %v1014 = vunpack.c.l.b16 %v308
        %v1015 = vunpack.c.h.b16 %v308
        %v1016 = vunpack.c.l.b16 %v309
        %v1017 = vunpack.c.h.b16 %v309
        %v1018 = vunpack.c.l.b16 %v310
        %v1019 = vunpack.c.h.b16 %v310
        %v1020 = vunpack.c.l.b16 %v311
        %v1021 = vunpack.c.h.b16 %v311
        %v1022 = vunpack.c.l.b16 %v312
        %v1023 = vunpack.c.h.b16 %v312
        %v1024 = vunpack.c.l.b16 %v313
        %v1025 = vunpack.c.h.b16 %v313
        %v1026 = vunpack.c.l.b16 %v314
        %v1027 = vunpack.c.h.b16 %v314
        %v1028 = vunpack.c.l.b16 %v315
        %v1029 = vunpack.c.h.b16 %v315
        %v1030 = vunpack.c.l.b16 %v316
        %v1031 = vunpack.c.h.b16 %v316
        %v1032 = vunpack.c.l.b16 %v317
        %v1033 = vunpack.c.h.b16 %v317
        %v1034 = vunpack.c.l.b16 %v318
        %v1035 = vunpack.c.h.b16 %v318
        %v1036 = vunpack.c.l.b16 %v319
        %v1037 = vunpack.c.h.b16 %v319
        %v1038 = vunpack.c.l.b16 %v320
        %v1039 = vunpack.c.h.b16 %v320
        %v1040 = vunpack.c.l.b16 %v321
        %v1041 = vunpack.c.h.b16 %v321
        %v1042 = vunpack.c.l.b16 %v322
        %v1043 = vunpack.c.h.b16 %v322
        %v1044 = vunpack.c.l.b16 %v323
        %v1045 = vunpack.c.h.b16 %v323
        %v1046 = vunpack.c.l.b16 %v324
        %v1047 = vunpack.c.h.b16 %v324
        %v1048 = vunpack.c.l.b16 %v325
        %v1049 = vunpack.c.h.b16 %v325
        %v1050 = vunpack.c.l.b16 %v326
        %v1051 = vunpack.c.h.b16 %v326
        %v1052 = vunpack.c.l.b16 %v327
        %v1053 = vunpack.c.h.b16 %v327
        %v1054 = vunpack.c.l.b16 %v328
        %v1055 = vunpack.c.h.b16 %v328
        %v1056 = vunpack.c.l.b16 %v329
        %v1057 = vunpack.c.h.b16 %v329
        %v1058 = vunpack.c.l.b16 %v330
        %v1059 = vunpack.c.h.b16 %v330
        %v1060 = vunpack.c.l.b16 %v331
        %v1061 = vunpack.c.h.b16 %v331
        %v1062 = vunpack.c.l.b16 %v332
        %v1063 = vunpack.c.h.b16 %v332
        %v1064 = vunpack.c.l.b16 %v333
        %v1065 = vunpack.c.h.b16 %v333
        %v1066 = vunpack.c.l.b16 %v334
        %v1067 = vunpack.c.h.b16 %v334
        %v1068 = vunpack.c.l.b16 %v335
        %v1069 = vunpack.c.h.b16 %v335
        %v1070 = vunpack.c.l.b16 %v336
        %v1071 = vunpack.c.h.b16 %v336
        %v1072 = vunpack.c.l.b16 %v337
        %v1073 = vunpack.c.h.b16 %v337
        %v1074 = vunpack.c.l.b16 %v338
        %v1075 = vunpack.c.h.b16 %v338
        %v1076 = vunpack.c.l.b16 %v339
        %v1077 = vunpack.c.h.b16 %v339
        %v1078 = vunpack.c.l.b16 %v340
        %v1079 = vunpack.c.h.b16 %v340
        %v1080 = vunpack.c.l.b16 %v341
        %v1081 = vunpack.c.h.b16 %v341
        %v1082 = vunpack.c.l.b16 %v342
        %v1083 = vunpack.c.h.b16 %v342
        %v1084 = vunpack.c.l.b16 %v343
        %v1085 = vunpack.c.h.b16 %v343
        %v1086 = vunpack.c.l.b16 %v344
        %v1087 = vunpack.c.h.b16 %v344
        %v1088 = vunpack.c.l.b16 %v345
        %v1089 = vunpack.c.h.b16 %v345
        %v1090 = vunpack.c.l.b16 %v346
        %v1091 = vunpack.c.h.b16 %v346
        %v1092 = vunpack.c.l.b16 %v347
        %v1093 = vunpack.c.h.b16 %v347
        %v1094 = vunpack.c.l.b16 %v348
        %v1095 = vunpack.c.h.b16 %v348
        %v1096 = vunpack.c.l.b16 %v349
        %v1097 = vunpack.c.h.b16 %v349
        %v1098 = vunpack.c.l.b16 %v350
        %v1099 = vunpack.c.h.b16 %v350
        %v1100 = vunpack.c.l.b16 %v351
        %v1101 = vunpack.c.h.b16 %v351
        %v1102 = vunpack.c.l.b16 %v352
        %v1103 = vunpack.c.h.b16 %v352
        %v1104 = vunpack.c.l.b16 %v353
        %v1105 = vunpack.c.h.b16 %v353
        %v1106 = vunpack.c.l.b16 %v354
        %v1107 = vunpack.c.h.b16 %v354
        %v1108 = vunpack.c.l.b16 %v355
        %v1109 = vunpack.c.h.b16 %v355
        %v1110 = vunpack.c.l.b16 %v356
        %v1111 = vunpack.c.h.b16 %v356
        %v1112 = vunpack.c.l.b16 %v357
        %v1113 = vunpack.c.h.b16 %v357
        %v1114 = vunpack.c.l.b16 %v358
        %v1115 = vunpack.c.h.b16 %v358
        %v1116 = vunpack.c.l.b16 %v359
        %v1117 = vunpack.c.h.b16 %v359
        %v1118 = vunpack.c.l.b16 %v360
        %v1119 = vunpack.c.h.b16 %v360
        %v1120 = vunpack.c.l.b16 %v361
        %v1121 = vunpack.c.h.b16 %v361
        %v1122 = vunpack.c.l.b16 %v362
        %v1123 = vunpack.c.h.b16 %v362
        %v1124 = vunpack.c.l.b16 %v363
        %v1125 = vunpack.c.h.b16 %v363
        %v1126 = vunpack.c.l.b16 %v364
        %v1127 = vunpack.c.h.b16 %v364
        %v1128 = vunpack.c.l.b16 %v365
        %v1129 = vunpack.c.h.b16 %v365
        %v1130 = vunpack.c.l.b16 %v366
        %v1131 = vunpack.c.h.b16 %v366
        %v1132 = vunpack.c.l.b16 %v367
        %v1133 = vunpack.c.h.b16 %v367
        %v1134 = vunpack.c.l.b16 %v368
        %v1135 = vunpack.c.h.b16 %v368
        %v1136 = vunpack.c.l.b16 %v369
        %v1137 = vunpack.c.h.b16 %v369
        %v1138 = vunpack.c.l.b16 %v370
        %v1139 = vunpack.c.h.b16 %v370
        %v1140 = vunpack.c.l.b16 %v371
        %v1141 = vunpack.c.h.b16 %v371
        %v1142 = vunpack.c.l.b16 %v372
        %v1143 = vunpack.c.h.b16 %v372
        %v1144 = vunpack.c.l.b16 %v373
        %v1145 = vunpack.c.h.b16 %v373
        %v1146 = vunpack.c.l.b16 %v374
        %v1147 = vunpack.c.h.b16 %v374
        %v1148 = vunpack.c.l.b16 %v375
        %v1149 = vunpack.c.h.b16 %v375
        %v1150 = vunpack.c.l.b16 %v376
        %v1151 = vunpack.c.h.b16 %v376
        %v1152 = vunpack.c.l.b16 %v377
        %v1153 = vunpack.c.h.b16 %v377
        %v1154 = vunpack.c.l.b16 %v378
        %v1155 = vunpack.c.h.b16 %v378
        %v1156 = vunpack.c.l.b16 %v379
        %v1157 = vunpack.c.h.b16 %v379
        %v1158 = vunpack.c.l.b16 %v380
        %v1159 = vunpack.c.h.b16 %v380
        %v1160 = vunpack.c.l.b16 %v381
        %v1161 = vunpack.c.h.b16 %v381
        %v1162 = vunpack.c.l.b16 %v382
        %v1163 = vunpack.c.h.b16 %v382
        %v1164 = vunpack.c.l.b16 %v383
        %v1165 = vunpack.c.h.b16 %v383
        %v1166 = vunpack.c.l.b16 %v384
        %v1167 = vunpack.c.h.b16 %v384
        %v1168 = vunpack.c.l.b16 %v385
        %v1169 = vunpack.c.h.b16 %v385
        %v1170 = vunpack.c.l.b16 %v386
        %v1171 = vunpack.c.h.b16 %v386
        %v1172 = vunpack.c.l.b16 %v387
        %v1173 = vunpack.c.h.b16 %v387
        %v1174 = vunpack.c.l.b16 %v388
        %v1175 = vunpack.c.h.b16 %v388
        %v1176 = vunpack.c.l.b16 %v389
        %v1177 = vunpack.c.h.b16 %v389
        %v1178 = vunpack.c.l.b16 %v390
        %v1179 = vunpack.c.h.b16 %v390
        %v1180 = vunpack.c.l.b16 %v391
        %v1181 = vunpack.c.h.b16 %v391
        %v1182 = vunpack.c.l.b16 %v392
        %v1183 = vunpack.c.h.b16 %v392
        %v1184 = vunpack.c.l.b16 %v393
        %v1185 = vunpack.c.h.b16 %v393
        %v1186 = vunpack.c.l.b16 %v394
        %v1187 = vunpack.c.h.b16 %v394
        %v1188 = vunpack.c.l.b16 %v395
        %v1189 = vunpack.c.h.b16 %v395
        %v1190 = vunpack.c.l.b16 %v396
        %v1191 = vunpack.c.h.b16 %v396
        %v1192 = vunpack.c.l.b16 %v397
        %v1193 = vunpack.c.h.b16 %v397
        %v1194 = vunpack.c.l.b16 %v398
        %v1195 = vunpack.c.h.b16 %v398
        %v1196 = vunpack.c.l.b16 %v399
        %v1197 = vunpack.c.h.b16 %v399
        %v1198 = vunpack.c.l.b16 %v400
        %v1199 = vunpack.c.h.b16 %v400
        %v1200 = vunpack.c.l.b16 %v401
        %v1201 = vunpack.c.h.b16 %v401
        %v1202 = vunpack.c.l.b16 %v402
        %v1203 = vunpack.c.h.b16 %v402
        %v1204 = vunpack.c.l.b16 %v403
        %v1205 = vunpack.c.h.b16 %v403
        %v1206 = vunpack.c.l.b16 %v404
        %v1207 = vunpack.c.h.b16 %v404
        %v1208 = vunpack.c.l.b16 %v405
        %v1209 = vunpack.c.h.b16 %v405
        %v1210 = vunpack.c.l.b16 %v406
        %v1211 = vunpack.c.h.b16 %v406
        %v1212 = vunpack.c.l.b16 %v407
        %v1213 = vunpack.c.h.b16 %v407
        %v1214 = vunpack.c.l.b16 %v408
        %v1215 = vunpack.c.h.b16 %v408
        %v1216 = vunpack.c.l.b16 %v409
        %v1217 = vunpack.c.h.b16 %v409
        %v1218 = vunpack.c.l.b16 %v410
        %v1219 = vunpack.c.h.b16 %v410
        %v1220 = vunpack.c.l.b16 %v411
        %v1221 = vunpack.c.h.b16 %v411
        %v1222 = vunpack.c.l.b16 %v412
        %v1223 = vunpack.c.h.b16 %v412
        %v1224 = vunpack.c.l.b16 %v413
        %v1225 = vunpack.c.h.b16 %v413
        %v1226 = vunpack.c.l.b16 %v414
        %v1227 = vunpack.c.h.b16 %v414
        %v1228 = vunpack.c.l.b16 %v415
        %v1229 = vunpack.c.h.b16 %v415
        %v1230 = vunpack.c.l.b16 %v416
        %v1231 = vunpack.c.h.b16 %v416
        %v1232 = vunpack.c.l.b16 %v417
        %v1233 = vunpack.c.h.b16 %v417
        %v1234 = vunpack.c.l.b16 %v418
        %v1235 = vunpack.c.h.b16 %v418
        %v1236 = vunpack.c.l.b16 %v419
        %v1237 = vunpack.c.h.b16 %v419
        %v1238 = vunpack.c.l.b16 %v420
        %v1239 = vunpack.c.h.b16 %v420
        %v1240 = vunpack.c.l.b16 %v421
        %v1241 = vunpack.c.h.b16 %v421
        %v1242 = vunpack.c.l.b16 %v422
        %v1243 = vunpack.c.h.b16 %v422
        %v1244 = vunpack.c.l.b16 %v423
        %v1245 = vunpack.c.h.b16 %v423
        %v1246 = vunpack.c.l.b16 %v424
        %v1247 = vunpack.c.h.b16 %v424
        %v1248 = vunpack.c.l.b16 %v425
        %v1249 = vunpack.c.h.b16 %v425
        %v1250 = vunpack.c.l.b16 %v426
        %v1251 = vunpack.c.h.b16 %v426
        %v1252 = vunpack.c.l.b16 %v427
        %v1253 = vunpack.c.h.b16 %v427
        %v1254 = vunpack.c.l.b16 %v428
        %v1255 = vunpack.c.h.b16 %v428
        %v1256 = vunpack.c.l.b16 %v429
        %v1257 = vunpack.c.h.b16 %v429
        %v1258 = vunpack.c.l.b16 %v430
        %v1259 = vunpack.c.h.b16 %v430
        %v1260 = vunpack.c.l.b16 %v431
        %v1261 = vunpack.c.h.b16 %v431
        %v1262 = vunpack.c.l.b16 %v432
        %v1263 = vunpack.c.h.b16 %v432
        %v1264 = vunpack.c.l.b16 %v433
        %v1265 = vunpack.c.h.b16 %v433
        %v1266 = vunpack.c.l.b16 %v434
        %v1267 = vunpack.c.h.b16 %v434
        %v1268 = vunpack.c.l.b16 %v435
        %v1269 = vunpack.c.h.b16 %v435
        %v1270 = vunpack.c.l.b16 %v436
        %v1271 = vunpack.c.h.b16 %v436
        %v1272 = vunpack.c.l.b16 %v437
        %v1273 = vunpack.c.h.b16 %v437
        %v1274 = vunpack.c.l.b16 %v438
        %v1275 = vunpack.c.h.b16 %v438
        %v1276 = vunpack.c.l.b16 %v439
        %v1277 = vunpack.c.h.b16 %v439
        %v1278 = vunpack.c.l.b16 %v440
        %v1279 = vunpack.c.h.b16 %v440
        %v1280 = vunpack.c.l.b16 %v441
        %v1281 = vunpack.c.h.b16 %v441
        %v1282 = vunpack.c.l.b16 %v442
        %v1283 = vunpack.c.h.b16 %v442
        %v1284 = vunpack.c.l.b16 %v443
        %v1285 = vunpack.c.h.b16 %v443
        %v1286 = vunpack.c.l.b16 %v444
        %v1287 = vunpack.c.h.b16 %v444
        %v1288 = vunpack.c.l.b16 %v445
        %v1289 = vunpack.c.h.b16 %v445
        %v1290 = vunpack.c.l.b16 %v446
        %v1291 = vunpack.c.h.b16 %v446
        %v1292 = vunpack.c.l.b16 %v447
        %v1293 = vunpack.c.h.b16 %v447
        %v1294 = vunpack.c.l.b16 %v448
        %v1295 = vunpack.c.h.b16 %v448
        %v1296 = vunpack.c.l.b16 %v449
        %v1297 = vunpack.c.h.b16 %v449
        %v1298 = vunpack.c.l.b16 %v450
        %v1299 = vunpack.c.h.b16 %v450
        %v1300 = vunpack.c.l.b16 %v451
        %v1301 = vunpack.c.h.b16 %v451
        %v1302 = vunpack.c.l.b16 %v452
        %v1303 = vunpack.c.h.b16 %v452
        %v1304 = vunpack.c.l.b16 %v453
        %v1305 = vunpack.c.h.b16 %v453
        %v1306 = vunpack.c.l.b16 %v454
        %v1307 = vunpack.c.h.b16 %v454
        %v1308 = vunpack.c.l.b16 %v455
        %v1309 = vunpack.c.h.b16 %v455
        %v1310 = vunpack.c.l.b16 %v456
        %v1311 = vunpack.c.h.b16 %v456
        %v1312 = vunpack.c.l.b16 %v457
        %v1313 = vunpack.c.h.b16 %v457
        %v1314 = vunpack.c.l.b16 %v458
        %v1315 = vunpack.c.h.b16 %v458
        %v1316 = vunpack.c.l.b16 %v459
        %v1317 = vunpack.c.h.b16 %v459
        %v1318 = vunpack.c.l.b16 %v460
        %v1319 = vunpack.c.h.b16 %v460
        %v1320 = vunpack.c.l.b16 %v461
        %v1321 = vunpack.c.h.b16 %v461
        %v1322 = vunpack.c.l.b16 %v462
        %v1323 = vunpack.c.h.b16 %v462
        %v1324 = vunpack.c.l.b16 %v463
        %v1325 = vunpack.c.h.b16 %v463
        %v1326 = vunpack.c.l.b16 %v464
        %v1327 = vunpack.c.h.b16 %v464
        %v1328 = vunpack.c.l.b16 %v465
        %v1329 = vunpack.c.h.b16 %v465
        %v1330 = vunpack.c.l.b16 %v466
        %v1331 = vunpack.c.h.b16 %v466
        %v1332 = vunpack.c.l.b16 %v467
        %v1333 = vunpack.c.h.b16 %v467
        %v1334 = vunpack.c.l.b16 %v468
        %v1335 = vunpack.c.h.b16 %v468
        %v1336 = vunpack.c.l.b16 %v469
        %v1337 = vunpack.c.h.b16 %v469
        %v1338 = vunpack.c.l.b16 %v470
        %v1339 = vunpack.c.h.b16 %v470
        %v1340 = vunpack.c.l.b16 %v471
        %v1341 = vunpack.c.h.b16 %v471
        %v1342 = vunpack.c.l.b16 %v472
        %v1343 = vunpack.c.h.b16 %v472
        %v1344 = vunpack.c.l.b16 %v473
        %v1345 = vunpack.c.h.b16 %v473
        %v1346 = vunpack.c.l.b16 %v474
        %v1347 = vunpack.c.h.b16 %v474
        %v1348 = vunpack.c.l.b16 %v475
        %v1349 = vunpack.c.h.b16 %v475
        %v1350 = vunpack.c.l.b16 %v476
        %v1351 = vunpack.c.h.b16 %v476
        %v1352 = vunpack.c.l.b16 %v477
        %v1353 = vunpack.c.h.b16 %v477
        %v1354 = vunpack.c.l.b16 %v478
        %v1355 = vunpack.c.h.b16 %v478
        %v1356 = vunpack.c.l.b16 %v479
        %v1357 = vunpack.c.h.b16 %v479
        %v1358 = vunpack.c.l.b16 %v480
        %v1359 = vunpack.c.h.b16 %v480
        %v1360 = vunpack.c.l.b16 %v481
        %v1361 = vunpack.c.h.b16 %v481
        %v1362 = vunpack.c.l.b16 %v482
        %v1363 = vunpack.c.h.b16 %v482
        %v1364 = vunpack.c.l.b16 %v483
        %v1365 = vunpack.c.h.b16 %v483
        %v1366 = vunpack.c.l.b16 %v484
        %v1367 = vunpack.c.h.b16 %v484
        %v1368 = vunpack.c.l.b16 %v485
        %v1369 = vunpack.c.h.b16 %v485
        %v1370 = vunpack.c.l.b16 %v486
        %v1371 = vunpack.c.h.b16 %v486
        %v1372 = vunpack.c.l.b16 %v487
        %v1373 = vunpack.c.h.b16 %v487
        %v1374 = vunpack.c.l.b16 %v488
        %v1375 = vunpack.c.h.b16 %v488
        %v1376 = vunpack.c.l.b16 %v489
        %v1377 = vunpack.c.h.b16 %v489
        %v1378 = vunpack.c.l.b16 %v490
        %v1379 = vunpack.c.h.b16 %v490
        %v1380 = vunpack.c.l.b16 %v491
        %v1381 = vunpack.c.h.b16 %v491
        %v1382 = vunpack.c.l.b16 %v492
        %v1383 = vunpack.c.h.b16 %v492
        %v1384 = vunpack.c.l.b16 %v493
        %v1385 = vunpack.c.h.b16 %v493
        %v1386 = vunpack.c.l.b16 %v494
        %v1387 = vunpack.c.h.b16 %v494
        %v1388 = vunpack.c.l.b16 %v495
        %v1389 = vunpack.c.h.b16 %v495
        %v1390 = vpack.c.b16 %v820, %v814
        %v1391 = vpack.c.b16 %v821, %v815
        %v1392 = vpack.c.b16 %v822, %v816
        %v1393 = vpack.c.b16 %v823, %v817
        %v1394 = vpack.c.b16 %v824, %v818
        %v1395 = vpack.c.b16 %v825, %v819
        %v1396 = vpack.c.b16 %v832, %v826
        %v1397 = vpack.c.b16 %v833, %v827
        %v1398 = vpack.c.b16 %v834, %v828
        %v1399 = vpack.c.b16 %v835, %v829
        %v1400 = vpack.c.b16 %v836, %v830
        %v1401 = vpack.c.b16 %v837, %v831
        %v1402 = vpack.c.b16 %v844, %v838
        %v1403 = vpack.c.b16 %v845, %v839
        %v1404 = vpack.c.b16 %v846, %v840
        %v1405 = vpack.c.b16 %v847, %v841
        %v1406 = vpack.c.b16 %v848, %v842
        %v1407 = vpack.c.b16 %v849, %v843
        %v1408 = vpack.c.b16 %v856, %v850
        %v1409 = vpack.c.b16 %v857, %v851
        %v1410 = vpack.c.b16 %v858, %v852
        %v1411 = vpack.c.b16 %v859, %v853
        %v1412 = vpack.c.b16 %v860, %v854
        %v1413 = vpack.c.b16 %v861, %v855
        %v1414 = vpack.c.b16 %v868, %v862
        %v1415 = vpack.c.b16 %v869, %v863
        %v1416 = vpack.c.b16 %v870, %v864
        %v1417 = vpack.c.b16 %v871, %v865
        %v1418 = vpack.c.b16 %v872, %v866
        %v1419 = vpack.c.b16 %v873, %v867
        %v1420 = vpack.c.b16 %v880, %v874
        %v1421 = vpack.c.b16 %v881, %v875
        %v1422 = vpack.c.b16 %v882, %v876
        %v1423 = vpack.c.b16 %v883, %v877
        %v1424 = vpack.c.b16 %v884, %v878
        %v1425 = vpack.c.b16 %v885, %v879
        %v1426 = vpack.c.b16 %v892, %v886
        %v1427 = vpack.c.b16 %v893, %v887
        %v1428 = vpack.c.b16 %v894, %v888
        %v1429 = vpack.c.b16 %v895, %v889
        %v1430 = vpack.c.b16 %v896, %v890
        %v1431 = vpack.c.b16 %v897, %v891
        %v1432 = vpack.c.b16 %v904, %v898
        %v1433 = vpack.c.b16 %v905, %v899
        %v1434 = vpack.c.b16 %v906, %v900
        %v1435 = vpack.c.b16 %v907, %v901
        %v1436 = vpack.c.b16 %v908, %v902
        %v1437 = vpack.c.b16 %v909, %v903
        %v1438 = vpack.c.b16 %v916, %v910
        %v1439 = vpack.c.b16 %v917, %v911
        %v1440 = vpack.c.b16 %v918, %v912
        %v1441 = vpack.c.b16 %v919, %v913
        %v1442 = vpack.c.b16 %v920, %v914
        %v1443 = vpack.c.b16 %v921, %v915
        %v1444 = vpack.c.b16 %v928, %v922
        %v1445 = vpack.c.b16 %v929, %v923
        %v1446 = vpack.c.b16 %v930, %v924
        %v1447 = vpack.c.b16 %v931, %v925
        %v1448 = vpack.c.b16 %v932, %v926
        %v1449 = vpack.c.b16 %v933, %v927
        %v1450 = vpack.c.b16 %v940, %v934
        %v1451 = vpack.c.b16 %v941, %v935
        %v1452 = vpack.c.b16 %v942, %v936
        %v1453 = vpack.c.b16 %v943, %v937
        %v1454 = vpack.c.b16 %v944, %v938
        %v1455 = vpack.c.b16 %v945, %v939
        %v1456 = vpack.c.b16 %v952, %v946
        %v1457 = vpack.c.b16 %v953, %v947
        %v1458 = vpack.c.b16 %v954, %v948
        %v1459 = vpack.c.b16 %v955, %v949
        %v1460 = vpack.c.b16 %v956, %v950
        %v1461 = vpack.c.b16 %v957, %v951
        %v1462 = vpack.c.b16 %v964, %v958
        %v1463 = vpack.c.b16 %v965, %v959
        %v1464 = vpack.c.b16 %v966, %v960
        %v1465 = vpack.c.b16 %v967, %v961
        %v1466 = vpack.c.b16 %v968, %v962
        %v1467 = vpack.c.b16 %v969, %v963
        %v1468 = vpack.c.b16 %v976, %v970
        %v1469 = vpack.c.b16 %v977, %v971
        %v1470 = vpack.c.b16 %v978, %v972
        %v1471 = vpack.c.b16 %v979, %v973
        %v1472 = vpack.c.b16 %v980, %v974
        %v1473 = vpack.c.b16 %v981, %v975
        %v1474 = vpack.c.b16 %v988, %v982
        %v1475 = vpack.c.b16 %v989, %v983
        %v1476 = vpack.c.b16 %v990, %v984
        %v1477 = vpack.c.b16 %v991, %v985
        %v1478 = vpack.c.b16 %v992, %v986
        %v1479 = vpack.c.b16 %v993, %v987
        %v1480 = vpack.c.b16 %v1000, %v994
        %v1481 = vpack.c.b16 %v1001, %v995
        %v1482 = vpack.c.b16 %v1002, %v996
        %v1483 = vpack.c.b16 %v1003, %v997
        %v1484 = vpack.c.b16 %v1004, %v998
        %v1485 = vpack.c.b16 %v1005, %v999
        %v1486 = vpack.c.b16 %v1012, %v1006
        %v1487 = vpack.c.b16 %v1013, %v1007
        %v1488 = vpack.c.b16 %v1014, %v1008
        %v1489 = vpack.c.b16 %v1015, %v1009
        %v1490 = vpack.c.b16 %v1016, %v1010
        %v1491 = vpack.c.b16 %v1017, %v1011
        %v1492 = vpack.c.b16 %v1024, %v1018
        %v1493 = vpack.c.b16 %v1025, %v1019
        %v1494 = vpack.c.b16 %v1026, %v1020
        %v1495 = vpack.c.b16 %v1027, %v1021
        %v1496 = vpack.c.b16 %v1028, %v1022
        %v1497 = vpack.c.b16 %v1029, %v1023
        %v1498 = vpack.c.b16 %v1036, %v1030
        %v1499 = vpack.c.b16 %v1037, %v1031
        %v1500 = vpack.c.b16 %v1038, %v1032
        %v1501 = vpack.c.b16 %v1039, %v1033
        %v1502 = vpack.c.b16 %v1040, %v1034
        %v1503 = vpack.c.b16 %v1041, %v1035
        %v1504 = vpack.c.b16 %v1048, %v1042
        %v1505 = vpack.c.b16 %v1049, %v1043
        %v1506 = vpack.c.b16 %v1050, %v1044
        %v1507 = vpack.c.b16 %v1051, %v1045
        %v1508 = vpack.c.b16 %v1052, %v1046
        %v1509 = vpack.c.b16 %v1053, %v1047
        %v1510 = vpack.c.b16 %v1060, %v1054
        %v1511 = vpack.c.b16 %v1061, %v1055
        %v1512 = vpack.c.b16 %v1062, %v1056
        %v1513 = vpack.c.b16 %v1063, %v1057
        %v1514 = vpack.c.b16 %v1064, %v1058
        %v1515 = vpack.c.b16 %v1065, %v1059
        %v1516 = vpack.c.b16 %v1072, %v1066
        %v1517 = vpack.c.b16 %v1073, %v1067
        %v1518 = vpack.c.b16 %v1074, %v1068
        %v1519 = vpack.c.b16 %v1075, %v1069
        %v1520 = vpack.c.b16 %v1076, %v1070
        %v1521 = vpack.c.b16 %v1077, %v1071
        %v1522 = vpack.c.b16 %v1084, %v1078
        %v1523 = vpack.c.b16 %v1085, %v1079
        %v1524 = vpack.c.b16 %v1086, %v1080
        %v1525 = vpack.c.b16 %v1087, %v1081
        %v1526 = vpack.c.b16 %v1088, %v1082
        %v1527 = vpack.c.b16 %v1089, %v1083
        %v1528 = vpack.c.b16 %v1096, %v1090
        %v1529 = vpack.c.b16 %v1097, %v1091
        %v1530 = vpack.c.b16 %v1098, %v1092
        %v1531 = vpack.c.b16 %v1099, %v1093
        %v1532 = vpack.c.b16 %v1100, %v1094
        %v1533 = vpack.c.b16 %v1101, %v1095
        %v1534 = vpack.c.b16 %v1108, %v1102
        %v1535 = vpack.c.b16 %v1109, %v1103
        %v1536 = vpack.c.b16 %v1110, %v1104
        %v1537 = vpack.c.b16 %v1111, %v1105
        %v1538 = vpack.c.b16 %v1112, %v1106
        %v1539 = vpack.c.b16 %v1113, %v1107
        %v1540 = vpack.c.b16 %v1120, %v1114
        %v1541 = vpack.c.b16 %v1121, %v1115
        %v1542 = vpack.c.b16 %v1122, %v1116
        %v1543 = vpack.c.b16 %v1123, %v1117
        %v1544 = vpack.c.b16 %v1124, %v1118
        %v1545 = vpack.c.b16 %v1125, %v1119
        %v1546 = vpack.c.b16 %v1132, %v1126
        %v1547 = vpack.c.b16 %v1133, %v1127
        %v1548 = vpack.c.b16 %v1134, %v1128
        %v1549 = vpack.c.b16 %v1135, %v1129
        %v1550 = vpack.c.b16 %v1136, %v1130
        %v1551 = vpack.c.b16 %v1137, %v1131
        %v1552 = vpack.c.b16 %v1144, %v1138
        %v1553 = vpack.c.b16 %v1145, %v1139
        %v1554 = vpack.c.b16 %v1146, %v1140
        %v1555 = vpack.c.b16 %v1147, %v1141
        %v1556 = vpack.c.b16 %v1148, %v1142
        %v1557 = vpack.c.b16 %v1149, %v1143
        %v1558 = vpack.c.b16 %v1156, %v1150
        %v1559 = vpack.c.b16 %v1157, %v1151
        %v1560 = vpack.c.b16 %v1158, %v1152
        %v1561 = vpack.c.b16 %v1159, %v1153
        %v1562 = vpack.c.b16 %v1160, %v1154
        %v1563 = vpack.c.b16 %v1161, %v1155
        %v1564 = vpack.c.b16 %v1168, %v1162
        %v1565 = vpack.c.b16 %v1169, %v1163
        %v1566 = vpack.c.b16 %v1170, %v1164
        %v1567 = vpack.c.b16 %v1171, %v1165
        %v1568 = vpack.c.b16 %v1172, %v1166
        %v1569 = vpack.c.b16 %v1173, %v1167
        %v1570 = vpack.c.b16 %v1180, %v1174
        %v1571 = vpack.c.b16 %v1181, %v1175
        %v1572 = vpack.c.b16 %v1182, %v1176
        %v1573 = vpack.c.b16 %v1183, %v1177
        %v1574 = vpack.c.b16 %v1184, %v1178
        %v1575 = vpack.c.b16 %v1185, %v1179
        %v1576 = vpack.c.b16 %v1192, %v1186
        %v1577 = vpack.c.b16 %v1193, %v1187
        %v1578 = vpack.c.b16 %v1194, %v1188
        %v1579 = vpack.c.b16 %v1195, %v1189
        %v1580 = vpack.c.b16 %v1196, %v1190
        %v1581 = vpack.c.b16 %v1197, %v1191
        %v1582 = vpack.c.b16 %v1204, %v1198
        %v1583 = vpack.c.b16 %v1205, %v1199
        %v1584 = vpack.c.b16 %v1206, %v1200
        %v1585 = vpack.c.b16 %v1207, %v1201
        %v1586 = vpack.c.b16 %v1208, %v1202
        %v1587 = vpack.c.b16 %v1209, %v1203
        %v1588 = vpack.c.b16 %v1216, %v1210
        %v1589 = vpack.c.b16 %v1217, %v1211
        %v1590 = vpack.c.b16 %v1218, %v1212
        %v1591 = vpack.c.b16 %v1219, %v1213
        %v1592 = vpack.c.b16 %v1220, %v1214
        %v1593 = vpack.c.b16 %v1221, %v1215
        %v1594 = vpack.c.b16 %v1228, %v1222
        %v1595 = vpack.c.b16 %v1229, %v1223
        %v1596 = vpack.c.b16 %v1230, %v1224
        %v1597 = vpack.c.b16 %v1231, %v1225
        %v1598 = vpack.c.b16 %v1232, %v1226
        %v1599 = vpack.c.b16 %v1233, %v1227
        %v1600 = vpack.c.b16 %v1240, %v1234
        %v1601 = vpack.c.b16 %v1241, %v1235
        %v1602 = vpack.c.b16 %v1242, %v1236
        %v1603 = vpack.c.b16 %v1243, %v1237
        %v1604 = vpack.c.b16 %v1244, %v1238
        %v1605 = vpack.c.b16 %v1245, %v1239
        %v1606 = vpack.c.b16 %v1252, %v1246
        %v1607 = vpack.c.b16 %v1253, %v1247
        %v1608 = vpack.c.b16 %v1254, %v1248
        %v1609 = vpack.c.b16 %v1255, %v1249
        %v1610 = vpack.c.b16 %v1256, %v1250
        %v1611 = vpack.c.b16 %v1257, %v1251
        %v1612 = vpack.c.b16 %v1264, %v1258
        %v1613 = vpack.c.b16 %v1265, %v1259
        %v1614 = vpack.c.b16 %v1266, %v1260
        %v1615 = vpack.c.b16 %v1267, %v1261
        %v1616 = vpack.c.b16 %v1268, %v1262
        %v1617 = vpack.c.b16 %v1269, %v1263
        %v1618 = vpack.c.b16 %v1276, %v1270
        %v1619 = vpack.c.b16 %v1277, %v1271
        %v1620 = vpack.c.b16 %v1278, %v1272
        %v1621 = vpack.c.b16 %v1279, %v1273
        %v1622 = vpack.c.b16 %v1280, %v1274
        %v1623 = vpack.c.b16 %v1281, %v1275
        %v1624 = vpack.c.b16 %v1288, %v1282
        %v1625 = vpack.c.b16 %v1289, %v1283
        %v1626 = vpack.c.b16 %v1290, %v1284
        %v1627 = vpack.c.b16 %v1291, %v1285
        %v1628 = vpack.c.b16 %v1292, %v1286
        %v1629 = vpack.c.b16 %v1293, %v1287
        %v1630 = vpack.c.b16 %v1300, %v1294
        %v1631 = vpack.c.b16 %v1301, %v1295
        %v1632 = vpack.c.b16 %v1302, %v1296
        %v1633 = vpack.c.b16 %v1303, %v1297
        %v1634 = vpack.c.b16 %v1304, %v1298
        %v1635 = vpack.c.b16 %v1305, %v1299
        %v1636 = vpack.c.b16 %v1312, %v1306
        %v1637 = vpack.c.b16 %v1313, %v1307
        %v1638 = vpack.c.b16 %v1314, %v1308
        %v1639 = vpack.c.b16 %v1315, %v1309
        %v1640 = vpack.c.b16 %v1316, %v1310
        %v1641 = vpack.c.b16 %v1317, %v1311
        %v1642 = vpack.c.b16 %v1324, %v1318
        %v1643 = vpack.c.b16 %v1325, %v1319
        %v1644 = vpack.c.b16 %v1326, %v1320
        %v1645 = vpack.c.b16 %v1327, %v1321
        %v1646 = vpack.c.b16 %v1328, %v1322
        %v1647 = vpack.c.b16 %v1329, %v1323
        %v1648 = vpack.c.b16 %v1336, %v1330
        %v1649 = vpack.c.b16 %v1337, %v1331
        %v1650 = vpack.c.b16 %v1338, %v1332
        %v1651 = vpack.c.b16 %v1339, %v1333
        %v1652 = vpack.c.b16 %v1340, %v1334
        %v1653 = vpack.c.b16 %v1341, %v1335
        %v1654 = vpack.c.b16 %v1348, %v1342
        %v1655 = vpack.c.b16 %v1349, %v1343
        %v1656 = vpack.c.b16 %v1350, %v1344
        %v1657 = vpack.c.b16 %v1351, %v1345
        %v1658 = vpack.c.b16 %v1352, %v1346
        %v1659 = vpack.c.b16 %v1353, %v1347
        %v1660 = vpack.c.b16 %v1360, %v1354
        %v1661 = vpack.c.b16 %v1361, %v1355
        %v1662 = vpack.c.b16 %v1362, %v1356
        %v1663 = vpack.c.b16 %v1363, %v1357
        %v1664 = vpack.c.b16 %v1364, %v1358
        %v1665 = vpack.c.b16 %v1365, %v1359
        %v1666 = vpack.c.b16 %v1372, %v1366
        %v1667 = vpack.c.b16 %v1373, %v1367
        %v1668 = vpack.c.b16 %v1374, %v1368
        %v1669 = vpack.c.b16 %v1375, %v1369
        %v1670 = vpack.c.b16 %v1376, %v1370
        %v1671 = vpack.c.b16 %v1377, %v1371
        %v1672 = vpack.c.b16 %v1384, %v1378
        %v1673 = vpack.c.b16 %v1385, %v1379
        %v1674 = vpack.c.b16 %v1386, %v1380
        %v1675 = vpack.c.b16 %v1387, %v1381
        %v1676 = vpack.c.b16 %v1388, %v1382
        %v1677 = vpack.c.b16 %v1389, %v1383
        %1966 = vmatprep.subr.bf16.mxu0 %v1433
        %1967 = vmatpush1.bf16.msra.mxu0 %v1432
        %1968 = vmatprep.subr.bf16.mxu0 %v1427
        %1969 = vmatpush1.bf16.msra.mxu0 %v1426
        %1970 = vmatprep.subr.bf16.mxu0 %v1421
        %1971 = vmatpush1.bf16.msra.mxu0 %v1420
        %1972 = vmatprep.subr.bf16.mxu0 %v1415
        %1973 = vmatpush1.bf16.msra.mxu0 %v1414
        %1974 = vmatprep.subr.bf16.mxu0 %v1409
        %1975 = vmatpush1.bf16.msra.mxu0 %v1408
        %1976 = vmatprep.subr.bf16.mxu0 %v1403
        %1977 = vmatpush1.bf16.msra.mxu0 %v1402
        %1978 = vmatprep.subr.bf16.mxu0 %v1397
        %1979 = vmatpush1.bf16.msra.mxu0 %v1396
        %1980 = vmatprep.subr.bf16.mxu0 %v1391
        %1981 = vmatpush1.bf16.msra.mxu0 %v1390
        %1982 = vmatprep.subr.bf16.mxu0 %v1481
        %1983 = vmatpush2.bf16.msra.mxu0 %v1480
        %1984 = vmatprep.subr.bf16.mxu0 %v1475
        %1985 = vmatpush2.bf16.msra.mxu0 %v1474
        %1986 = vmatprep.subr.bf16.mxu0 %v1469
        %1987 = vmatpush2.bf16.msra.mxu0 %v1468
        %1988 = vmatprep.subr.bf16.mxu0 %v1463
        %1989 = vmatpush2.bf16.msra.mxu0 %v1462
        %1990 = vmatprep.subr.bf16.mxu0 %v1457
        %1991 = vmatpush2.bf16.msra.mxu0 %v1456
        %1992 = vmatprep.subr.bf16.mxu0 %v1451
        %1993 = vmatpush2.bf16.msra.mxu0 %v1450
        %1994 = vmatprep.subr.bf16.mxu0 %v1445
        %1995 = vmatpush2.bf16.msra.mxu0 %v1444
        %1996 = vmatprep.subr.bf16.mxu0 %v1439
        %1997 = vmatpush2.bf16.msra.mxu0 %v1438
        %1998 = vmatprep.mubr.bf16.mxu0 %v515
        %1999 = vmatmul.mubr.bf16.gmra.mxu0 %v514
        %v2000 = vpop.f32.mrf.mxu0
        %v2001 = vadd.f32 0.0, %v2000
        %v2002 = vpop.f32.mrf.mxu0
        %v2003 = vadd.f32 0.0, %v2002
        %v2004 = vpop.f32.mrf.mxu0
        %v2005 = vadd.f32 0.0, %v2004
        %v2006 = vpop.f32.mrf.mxu0
        %v2007 = vadd.f32 0.0, %v2006
        %2008 = vdwg.mxu0
        %2009 = vmatprep.subr.bf16.mxu0 %v1529
        %2010 = vmatpush1.bf16.msra.mxu0 %v1528
        %2011 = vmatprep.subr.bf16.mxu0 %v1523
        %2012 = vmatpush1.bf16.msra.mxu0 %v1522
        %2013 = vmatprep.subr.bf16.mxu0 %v1517
        %2014 = vmatpush1.bf16.msra.mxu0 %v1516
        %2015 = vmatprep.subr.bf16.mxu0 %v1511
        %2016 = vmatpush1.bf16.msra.mxu0 %v1510
        %2017 = vmatprep.subr.bf16.mxu0 %v1505
        %2018 = vmatpush1.bf16.msra.mxu0 %v1504
        %2019 = vmatprep.subr.bf16.mxu0 %v1499
        %2020 = vmatpush1.bf16.msra.mxu0 %v1498
        %2021 = vmatprep.subr.bf16.mxu0 %v1493
        %2022 = vmatpush1.bf16.msra.mxu0 %v1492
        %2023 = vmatprep.subr.bf16.mxu0 %v1487
        %2024 = vmatpush1.bf16.msra.mxu0 %v1486
        %2025 = vmatprep.subr.bf16.mxu0 %v1577
        %2026 = vmatpush2.bf16.msra.mxu0 %v1576
        %2027 = vmatprep.subr.bf16.mxu0 %v1571
        %2028 = vmatpush2.bf16.msra.mxu0 %v1570
        %2029 = vmatprep.subr.bf16.mxu0 %v1565
        %2030 = vmatpush2.bf16.msra.mxu0 %v1564
        %2031 = vmatprep.subr.bf16.mxu0 %v1559
        %2032 = vmatpush2.bf16.msra.mxu0 %v1558
        %2033 = vmatprep.subr.bf16.mxu0 %v1553
        %2034 = vmatpush2.bf16.msra.mxu0 %v1552
        %2035 = vmatprep.subr.bf16.mxu0 %v1547
        %2036 = vmatpush2.bf16.msra.mxu0 %v1546
        %2037 = vmatprep.subr.bf16.mxu0 %v1541
        %2038 = vmatpush2.bf16.msra.mxu0 %v1540
        %2039 = vmatprep.subr.bf16.mxu0 %v1535
        %2040 = vmatpush2.bf16.msra.mxu0 %v1534
        %2041 = vmatprep.mubr.bf16.mxu0 %v517
        %2042 = vmatmul.mubr.bf16.gmra.mxu0 %v516
        %v2043 = vpop.f32.mrf.mxu0
        %v2044 = vadd.f32 %v2001, %v2043
        %v2045 = vpop.f32.mrf.mxu0
        %v2046 = vadd.f32 %v2003, %v2045
        %v2047 = vpop.f32.mrf.mxu0
        %v2048 = vadd.f32 %v2005, %v2047
        %v2049 = vpop.f32.mrf.mxu0
        %v2050 = vadd.f32 %v2007, %v2049
        %2051 = vdwg.mxu0
        %2052 = vmatprep.subr.bf16.mxu0 %v1625
        %2053 = vmatpush1.bf16.msra.mxu0 %v1624
        %2054 = vmatprep.subr.bf16.mxu0 %v1619
        %2055 = vmatpush1.bf16.msra.mxu0 %v1618
        %2056 = vmatprep.subr.bf16.mxu0 %v1613
        %2057 = vmatpush1.bf16.msra.mxu0 %v1612
        %2058 = vmatprep.subr.bf16.mxu0 %v1607
        %2059 = vmatpush1.bf16.msra.mxu0 %v1606
        %2060 = vmatprep.subr.bf16.mxu0 %v1601
        %2061 = vmatpush1.bf16.msra.mxu0 %v1600
        %2062 = vmatprep.subr.bf16.mxu0 %v1595
        %2063 = vmatpush1.bf16.msra.mxu0 %v1594
        %2064 = vmatprep.subr.bf16.mxu0 %v1589
        %2065 = vmatpush1.bf16.msra.mxu0 %v1588
        %2066 = vmatprep.subr.bf16.mxu0 %v1583
        %2067 = vmatpush1.bf16.msra.mxu0 %v1582
        %2068 = vmatprep.subr.bf16.mxu0 %v1673
        %2069 = vmatpush2.bf16.msra.mxu0 %v1672
        %2070 = vmatprep.subr.bf16.mxu0 %v1667
        %2071 = vmatpush2.bf16.msra.mxu0 %v1666
        %2072 = vmatprep.subr.bf16.mxu0 %v1661
        %2073 = vmatpush2.bf16.msra.mxu0 %v1660
        %2074 = vmatprep.subr.bf16.mxu0 %v1655
        %2075 = vmatpush2.bf16.msra.mxu0 %v1654
        %2076 = vmatprep.subr.bf16.mxu0 %v1649
        %2077 = vmatpush2.bf16.msra.mxu0 %v1648
        %2078 = vmatprep.subr.bf16.mxu0 %v1643
        %2079 = vmatpush2.bf16.msra.mxu0 %v1642
        %2080 = vmatprep.subr.bf16.mxu0 %v1637
        %2081 = vmatpush2.bf16.msra.mxu0 %v1636
        %2082 = vmatprep.subr.bf16.mxu0 %v1631
        %2083 = vmatpush2.bf16.msra.mxu0 %v1630
        %2084 = vmatprep.mubr.bf16.mxu0 %v519
        %2085 = vmatmul.mubr.bf16.gmra.mxu0 %v518
        %v2086 = vpop.f32.mrf.mxu0
        %v2087 = vadd.f32 %v2044, %v2086
        %v2088 = vpop.f32.mrf.mxu0
        %v2089 = vadd.f32 %v2046, %v2088
        %v2090 = vpop.f32.mrf.mxu0
        %v2091 = vadd.f32 %v2048, %v2090
        %v2092 = vpop.f32.mrf.mxu0
        %v2093 = vadd.f32 %v2050, %v2092
        %2094 = vdwg.mxu0
        %2095 = vmatprep.subr.bf16.mxu0 %v1435
        %2096 = vmatpush1.bf16.msra.mxu0 %v1434
        %2097 = vmatprep.subr.bf16.mxu0 %v1429
        %2098 = vmatpush1.bf16.msra.mxu0 %v1428
        %2099 = vmatprep.subr.bf16.mxu0 %v1423
        %2100 = vmatpush1.bf16.msra.mxu0 %v1422
        %2101 = vmatprep.subr.bf16.mxu0 %v1417
        %2102 = vmatpush1.bf16.msra.mxu0 %v1416
        %2103 = vmatprep.subr.bf16.mxu0 %v1411
        %2104 = vmatpush1.bf16.msra.mxu0 %v1410
        %2105 = vmatprep.subr.bf16.mxu0 %v1405
        %2106 = vmatpush1.bf16.msra.mxu0 %v1404
        %2107 = vmatprep.subr.bf16.mxu0 %v1399
        %2108 = vmatpush1.bf16.msra.mxu0 %v1398
        %2109 = vmatprep.subr.bf16.mxu0 %v1393
        %2110 = vmatpush1.bf16.msra.mxu0 %v1392
        %2111 = vmatprep.subr.bf16.mxu0 %v1483
        %2112 = vmatpush2.bf16.msra.mxu0 %v1482
        %2113 = vmatprep.subr.bf16.mxu0 %v1477
        %2114 = vmatpush2.bf16.msra.mxu0 %v1476
        %2115 = vmatprep.subr.bf16.mxu0 %v1471
        %2116 = vmatpush2.bf16.msra.mxu0 %v1470
        %2117 = vmatprep.subr.bf16.mxu0 %v1465
        %2118 = vmatpush2.bf16.msra.mxu0 %v1464
        %2119 = vmatprep.subr.bf16.mxu0 %v1459
        %2120 = vmatpush2.bf16.msra.mxu0 %v1458
        %2121 = vmatprep.subr.bf16.mxu0 %v1453
        %2122 = vmatpush2.bf16.msra.mxu0 %v1452
        %2123 = vmatprep.subr.bf16.mxu0 %v1447
        %2124 = vmatpush2.bf16.msra.mxu0 %v1446
        %2125 = vmatprep.subr.bf16.mxu0 %v1441
        %2126 = vmatpush2.bf16.msra.mxu0 %v1440
        %2127 = vmatprep.mubr.bf16.mxu0 %v515
        %2128 = vmatmul.mubr.bf16.gmra.mxu0 %v514
        %v2129 = vpop.f32.mrf.mxu0
        %v2130 = vadd.f32 0.0, %v2129
        %v2131 = vpop.f32.mrf.mxu0
        %v2132 = vadd.f32 0.0, %v2131
        %v2133 = vpop.f32.mrf.mxu0
        %v2134 = vadd.f32 0.0, %v2133
        %v2135 = vpop.f32.mrf.mxu0
        %v2136 = vadd.f32 0.0, %v2135
        %2137 = vdwg.mxu0
        %2138 = vmatprep.subr.bf16.mxu0 %v1531
        %2139 = vmatpush1.bf16.msra.mxu0 %v1530
        %2140 = vmatprep.subr.bf16.mxu0 %v1525
        %2141 = vmatpush1.bf16.msra.mxu0 %v1524
        %2142 = vmatprep.subr.bf16.mxu0 %v1519
        %2143 = vmatpush1.bf16.msra.mxu0 %v1518
        %2144 = vmatprep.subr.bf16.mxu0 %v1513
        %2145 = vmatpush1.bf16.msra.mxu0 %v1512
        %2146 = vmatprep.subr.bf16.mxu0 %v1507
        %2147 = vmatpush1.bf16.msra.mxu0 %v1506
        %2148 = vmatprep.subr.bf16.mxu0 %v1501
        %2149 = vmatpush1.bf16.msra.mxu0 %v1500
        %2150 = vmatprep.subr.bf16.mxu0 %v1495
        %2151 = vmatpush1.bf16.msra.mxu0 %v1494
        %2152 = vmatprep.subr.bf16.mxu0 %v1489
        %2153 = vmatpush1.bf16.msra.mxu0 %v1488
        %2154 = vmatprep.subr.bf16.mxu0 %v1579
        %2155 = vmatpush2.bf16.msra.mxu0 %v1578
        %2156 = vmatprep.subr.bf16.mxu0 %v1573
        %2157 = vmatpush2.bf16.msra.mxu0 %v1572
        %2158 = vmatprep.subr.bf16.mxu0 %v1567
        %2159 = vmatpush2.bf16.msra.mxu0 %v1566
        %2160 = vmatprep.subr.bf16.mxu0 %v1561
        %2161 = vmatpush2.bf16.msra.mxu0 %v1560
        %2162 = vmatprep.subr.bf16.mxu0 %v1555
        %2163 = vmatpush2.bf16.msra.mxu0 %v1554
        %2164 = vmatprep.subr.bf16.mxu0 %v1549
        %2165 = vmatpush2.bf16.msra.mxu0 %v1548
        %2166 = vmatprep.subr.bf16.mxu0 %v1543
        %2167 = vmatpush2.bf16.msra.mxu0 %v1542
        %2168 = vmatprep.subr.bf16.mxu0 %v1537
        %2169 = vmatpush2.bf16.msra.mxu0 %v1536
        %2170 = vmatprep.mubr.bf16.mxu0 %v517
        %2171 = vmatmul.mubr.bf16.gmra.mxu0 %v516
        %v2172 = vpop.f32.mrf.mxu0
        %v2173 = vadd.f32 %v2130, %v2172
        %v2174 = vpop.f32.mrf.mxu0
        %v2175 = vadd.f32 %v2132, %v2174
        %v2176 = vpop.f32.mrf.mxu0
        %v2177 = vadd.f32 %v2134, %v2176
        %v2178 = vpop.f32.mrf.mxu0
        %v2179 = vadd.f32 %v2136, %v2178
        %2180 = vdwg.mxu0
        %2181 = vmatprep.subr.bf16.mxu0 %v1627
        %2182 = vmatpush1.bf16.msra.mxu0 %v1626
        %2183 = vmatprep.subr.bf16.mxu0 %v1621
        %2184 = vmatpush1.bf16.msra.mxu0 %v1620
        %2185 = vmatprep.subr.bf16.mxu0 %v1615
        %2186 = vmatpush1.bf16.msra.mxu0 %v1614
        %2187 = vmatprep.subr.bf16.mxu0 %v1609
        %2188 = vmatpush1.bf16.msra.mxu0 %v1608
        %2189 = vmatprep.subr.bf16.mxu0 %v1603
        %2190 = vmatpush1.bf16.msra.mxu0 %v1602
        %2191 = vmatprep.subr.bf16.mxu0 %v1597
        %2192 = vmatpush1.bf16.msra.mxu0 %v1596
        %2193 = vmatprep.subr.bf16.mxu0 %v1591
        %2194 = vmatpush1.bf16.msra.mxu0 %v1590
        %2195 = vmatprep.subr.bf16.mxu0 %v1585
        %2196 = vmatpush1.bf16.msra.mxu0 %v1584
        %2197 = vmatprep.subr.bf16.mxu0 %v1675
        %2198 = vmatpush2.bf16.msra.mxu0 %v1674
        %2199 = vmatprep.subr.bf16.mxu0 %v1669
        %2200 = vmatpush2.bf16.msra.mxu0 %v1668
        %2201 = vmatprep.subr.bf16.mxu0 %v1663
        %2202 = vmatpush2.bf16.msra.mxu0 %v1662
        %2203 = vmatprep.subr.bf16.mxu0 %v1657
        %2204 = vmatpush2.bf16.msra.mxu0 %v1656
        %2205 = vmatprep.subr.bf16.mxu0 %v1651
        %2206 = vmatpush2.bf16.msra.mxu0 %v1650
        %2207 = vmatprep.subr.bf16.mxu0 %v1645
        %2208 = vmatpush2.bf16.msra.mxu0 %v1644
        %2209 = vmatprep.subr.bf16.mxu0 %v1639
        %2210 = vmatpush2.bf16.msra.mxu0 %v1638
        %2211 = vmatprep.subr.bf16.mxu0 %v1633
        %2212 = vmatpush2.bf16.msra.mxu0 %v1632
        %2213 = vmatprep.mubr.bf16.mxu0 %v519
        %2214 = vmatmul.mubr.bf16.gmra.mxu0 %v518
        %v2215 = vpop.f32.mrf.mxu0
        %v2216 = vadd.f32 %v2173, %v2215
        %v2217 = vpop.f32.mrf.mxu0
        %v2218 = vadd.f32 %v2175, %v2217
        %v2219 = vpop.f32.mrf.mxu0
        %v2220 = vadd.f32 %v2177, %v2219
        %v2221 = vpop.f32.mrf.mxu0
        %v2222 = vadd.f32 %v2179, %v2221
        %2223 = vdwg.mxu0
        %2224 = vmatprep.subr.bf16.mxu0 %v1437
        %2225 = vmatpush1.bf16.msra.mxu0 %v1436
        %2226 = vmatprep.subr.bf16.mxu0 %v1431
        %2227 = vmatpush1.bf16.msra.mxu0 %v1430
        %2228 = vmatprep.subr.bf16.mxu0 %v1425
        %2229 = vmatpush1.bf16.msra.mxu0 %v1424
        %2230 = vmatprep.subr.bf16.mxu0 %v1419
        %2231 = vmatpush1.bf16.msra.mxu0 %v1418
        %2232 = vmatprep.subr.bf16.mxu0 %v1413
        %2233 = vmatpush1.bf16.msra.mxu0 %v1412
        %2234 = vmatprep.subr.bf16.mxu0 %v1407
        %2235 = vmatpush1.bf16.msra.mxu0 %v1406
        %2236 = vmatprep.subr.bf16.mxu0 %v1401
        %2237 = vmatpush1.bf16.msra.mxu0 %v1400
        %2238 = vmatprep.subr.bf16.mxu0 %v1395
        %2239 = vmatpush1.bf16.msra.mxu0 %v1394
        %2240 = vmatprep.subr.bf16.mxu0 %v1485
        %2241 = vmatpush2.bf16.msra.mxu0 %v1484
        %2242 = vmatprep.subr.bf16.mxu0 %v1479
        %2243 = vmatpush2.bf16.msra.mxu0 %v1478
        %2244 = vmatprep.subr.bf16.mxu0 %v1473
        %2245 = vmatpush2.bf16.msra.mxu0 %v1472
        %2246 = vmatprep.subr.bf16.mxu0 %v1467
        %2247 = vmatpush2.bf16.msra.mxu0 %v1466
        %2248 = vmatprep.subr.bf16.mxu0 %v1461
        %2249 = vmatpush2.bf16.msra.mxu0 %v1460
        %2250 = vmatprep.subr.bf16.mxu0 %v1455
        %2251 = vmatpush2.bf16.msra.mxu0 %v1454
        %2252 = vmatprep.subr.bf16.mxu0 %v1449
        %2253 = vmatpush2.bf16.msra.mxu0 %v1448
        %2254 = vmatprep.subr.bf16.mxu0 %v1443
        %2255 = vmatpush2.bf16.msra.mxu0 %v1442
        %2256 = vmatprep.mubr.bf16.mxu0 %v515
        %2257 = vmatmul.mubr.bf16.gmra.mxu0 %v514
        %v2258 = vpop.f32.mrf.mxu0
        %v2259 = vadd.f32 0.0, %v2258
        %v2260 = vpop.f32.mrf.mxu0
        %v2261 = vadd.f32 0.0, %v2260
        %v2262 = vpop.f32.mrf.mxu0
        %v2263 = vadd.f32 0.0, %v2262
        %v2264 = vpop.f32.mrf.mxu0
        %v2265 = vadd.f32 0.0, %v2264
        %2266 = vdwg.mxu0
        %2267 = vmatprep.subr.bf16.mxu0 %v1533
        %2268 = vmatpush1.bf16.msra.mxu0 %v1532
        %2269 = vmatprep.subr.bf16.mxu0 %v1527
        %2270 = vmatpush1.bf16.msra.mxu0 %v1526
        %2271 = vmatprep.subr.bf16.mxu0 %v1521
        %2272 = vmatpush1.bf16.msra.mxu0 %v1520
        %2273 = vmatprep.subr.bf16.mxu0 %v1515
        %2274 = vmatpush1.bf16.msra.mxu0 %v1514
        %2275 = vmatprep.subr.bf16.mxu0 %v1509
        %2276 = vmatpush1.bf16.msra.mxu0 %v1508
        %2277 = vmatprep.subr.bf16.mxu0 %v1503
        %2278 = vmatpush1.bf16.msra.mxu0 %v1502
        %2279 = vmatprep.subr.bf16.mxu0 %v1497
        %2280 = vmatpush1.bf16.msra.mxu0 %v1496
        %2281 = vmatprep.subr.bf16.mxu0 %v1491
        %2282 = vmatpush1.bf16.msra.mxu0 %v1490
        %2283 = vmatprep.subr.bf16.mxu0 %v1581
        %2284 = vmatpush2.bf16.msra.mxu0 %v1580
        %2285 = vmatprep.subr.bf16.mxu0 %v1575
        %2286 = vmatpush2.bf16.msra.mxu0 %v1574
        %2287 = vmatprep.subr.bf16.mxu0 %v1569
        %2288 = vmatpush2.bf16.msra.mxu0 %v1568
        %2289 = vmatprep.subr.bf16.mxu0 %v1563
        %2290 = vmatpush2.bf16.msra.mxu0 %v1562
        %2291 = vmatprep.subr.bf16.mxu0 %v1557
        %2292 = vmatpush2.bf16.msra.mxu0 %v1556
        %2293 = vmatprep.subr.bf16.mxu0 %v1551
        %2294 = vmatpush2.bf16.msra.mxu0 %v1550
        %2295 = vmatprep.subr.bf16.mxu0 %v1545
        %2296 = vmatpush2.bf16.msra.mxu0 %v1544
        %2297 = vmatprep.subr.bf16.mxu0 %v1539
        %2298 = vmatpush2.bf16.msra.mxu0 %v1538
        %2299 = vmatprep.mubr.bf16.mxu0 %v517
        %2300 = vmatmul.mubr.bf16.gmra.mxu0 %v516
        %v2301 = vpop.f32.mrf.mxu0
        %v2302 = vadd.f32 %v2259, %v2301
        %v2303 = vpop.f32.mrf.mxu0
        %v2304 = vadd.f32 %v2261, %v2303
        %v2305 = vpop.f32.mrf.mxu0
        %v2306 = vadd.f32 %v2263, %v2305
        %v2307 = vpop.f32.mrf.mxu0
        %v2308 = vadd.f32 %v2265, %v2307
        %2309 = vdwg.mxu0
        %2310 = vmatprep.subr.bf16.mxu0 %v1629
        %2311 = vmatpush1.bf16.msra.mxu0 %v1628
        %2312 = vmatprep.subr.bf16.mxu0 %v1623
        %2313 = vmatpush1.bf16.msra.mxu0 %v1622
        %2314 = vmatprep.subr.bf16.mxu0 %v1617
        %2315 = vmatpush1.bf16.msra.mxu0 %v1616
        %2316 = vmatprep.subr.bf16.mxu0 %v1611
        %2317 = vmatpush1.bf16.msra.mxu0 %v1610
        %2318 = vmatprep.subr.bf16.mxu0 %v1605
        %2319 = vmatpush1.bf16.msra.mxu0 %v1604
        %2320 = vmatprep.subr.bf16.mxu0 %v1599
        %2321 = vmatpush1.bf16.msra.mxu0 %v1598
        %2322 = vmatprep.subr.bf16.mxu0 %v1593
        %2323 = vmatpush1.bf16.msra.mxu0 %v1592
        %2324 = vmatprep.subr.bf16.mxu0 %v1587
        %2325 = vmatpush1.bf16.msra.mxu0 %v1586
        %2326 = vmatprep.subr.bf16.mxu0 %v1677
        %2327 = vmatpush2.bf16.msra.mxu0 %v1676
        %2328 = vmatprep.subr.bf16.mxu0 %v1671
        %2329 = vmatpush2.bf16.msra.mxu0 %v1670
        %2330 = vmatprep.subr.bf16.mxu0 %v1665
        %2331 = vmatpush2.bf16.msra.mxu0 %v1664
        %2332 = vmatprep.subr.bf16.mxu0 %v1659
        %2333 = vmatpush2.bf16.msra.mxu0 %v1658
        %2334 = vmatprep.subr.bf16.mxu0 %v1653
        %2335 = vmatpush2.bf16.msra.mxu0 %v1652
        %2336 = vmatprep.subr.bf16.mxu0 %v1647
        %2337 = vmatpush2.bf16.msra.mxu0 %v1646
        %2338 = vmatprep.subr.bf16.mxu0 %v1641
        %2339 = vmatpush2.bf16.msra.mxu0 %v1640
        %2340 = vmatprep.subr.bf16.mxu0 %v1635
        %2341 = vmatpush2.bf16.msra.mxu0 %v1634
        %2342 = vmatprep.mubr.bf16.mxu0 %v519
        %2343 = vmatmul.mubr.bf16.gmra.mxu0 %v518
        %v2344 = vpop.f32.mrf.mxu0
        %v2345 = vadd.f32 %v2302, %v2344
        %v2346 = vpop.f32.mrf.mxu0
        %v2347 = vadd.f32 %v2304, %v2346
        %v2348 = vpop.f32.mrf.mxu0
        %v2349 = vadd.f32 %v2306, %v2348
        %v2350 = vpop.f32.mrf.mxu0
        %v2351 = vadd.f32 %v2308, %v2350
        %2352 = vdwg.mxu0
        %2353 = vst [vmem:[%s199] sm:$0xff] %v2087
        %2354 = vst [vmem:[%s199 + $0x8] sm:$0xff] %v2089
        %2355 = vst [vmem:[%s199 + $0x10] sm:$0xff] %v2216
        %2356 = vst [vmem:[%s199 + $0x18] sm:$0xff] %v2218
        %2357 = vst [vmem:[%s199 + $0x20] sm:$0xff] %v2345
        %2358 = vst [vmem:[%s199 + $0x28] sm:$0xff] %v2347
        %2359 = vst [vmem:[%s199 + $0x30] sm:$0xff] %v2091
        %2360 = vst [vmem:[%s199 + $0x38] sm:$0xff] %v2093
        %2361 = vst [vmem:[%s199 + $0x40] sm:$0xff] %v2220
        %2362 = vst [vmem:[%s199 + $0x48] sm:$0xff] %v2222
        %2363 = vst [vmem:[%s199 + $0x50] sm:$0xff] %v2349
        %2364 = vst [vmem:[%s199 + $0x58] sm:$0xff] %v2351
        %s2365 = sand.u32 %s94, 1
        %s2366 = scalar_lea.sflag [#allocation4], %s2365
        %s2367 = sand.u32 %s94, 1
        %s2368 = smul.addr %s2367, 96
        %s2369 = scalar_lea.vmem [#allocation7], %s2368
        // Predicated region
        $region37: #{tpu_custom_call.1} parent=27 // pred_check
          %p2370 = pneg %p104
        $region38: #{tpu_custom_call.1} parent=27 // pred_check_branch
          %2372 = sbr.rel (%p2370) target = $region40
        $region39: #{tpu_custom_call.1} parent=27 // pred_region
          %s2373 = smul.u32 2, %s25
          %s2375 = ssub.s32 1536, 1536
          %2376 = vsyncadd %s2366, %s2375
          %s2377 = smul.addr %s2373, 6
          %s2378 = smul.addr %s24, 12
          %s2379 = sadd.s32 %s2377, %s2378
          %s2380 = smul.addr %s2379, 128
          %s2381 = scalar_lea.hbm %s2, %s2380
          %s2382 = sshll.u32 %s2369, 4
          %s2383 = int_to_ptr.vmem [resolvable:$true] %s2382
          %2388 = dma.vmem_to_hbm [thread:$0]  %s2383, 1536, %s2381, %s2366, 768, 768, 48
        $region40: #{tpu_custom_call.1} parent=27 // pred_fallthru
          _
      $region28: #{tpu_custom_call.1} parent=5 // pred_fallthru
        _
      %p2389 = scmp.le.s32.totalorder 2, %s15
      // Predicated region
      $region41: #{tpu_custom_call.1} parent=5 // pred_check
        %p2390 = pneg %p2389
      $region42: #{tpu_custom_call.1} parent=5 // pred_check_branch
        %2392 = sbr.rel (%p2390) target = $region44
      $region43: #{tpu_custom_call.1} parent=5 // pred_region
        %s2393 = ssub.s32 %s15, 2
        // Predicated region
        $region45: #{tpu_custom_call.1} parent=43 // pred_check
          %p2394 = pneg %p110
        $region46: #{tpu_custom_call.1} parent=43 // pred_check_branch
          %2396 = sbr.rel (%p2394) target = $region48
        $region47: #{tpu_custom_call.1} parent=43 // pred_region
          %s2397 = sand.u32 %s95, 1
          %s2398 = scalar_lea.sflag [#allocation4], %s2397
          %s2399 = sand.u32 %s95, 1
          %s2400 = smul.addr %s2399, 96
          %s2401 = scalar_lea.vmem [#allocation7], %s2400
          %2402 = dma.done %s2398, 1536
        $region48: #{tpu_custom_call.1} parent=43 // pred_fallthru
          _
      $region44: #{tpu_custom_call.1} parent=5 // pred_fallthru
        _
    $region6: #{tpu_custom_call.1} parent=1 // loop_footer
      %s19 = sadd.s32 1, %s15
    $region7: #{tpu_custom_call.1} parent=1 // loop_footer_branch
      %14 = sbr.rel target = $region3
    $region8: #{tpu_custom_call.1} parent=1 // loop_exit
      _
    %2403 = vsyncpa [#allocation3], 1
    %s2404 = scalar_lea.sflag [#allocation3], 1
    %2405 = vsyncpa %s2404, 1
    %2406 = vsyncpa [#allocation6], 1
    %s2407 = scalar_lea.sflag [#allocation6], 1
    %2408 = vsyncpa %s2407, 1
    %2409 = vsyncpa [#allocation4], 1
    %s2410 = scalar_lea.sflag [#allocation4], 1
    %2411 = vsyncpa %s2410, 1

</llo_original>
